<compile_context>
chip_gen: v7x
topology: tpu7x:2x2x1
jax: 0.10.0
libtpu: 0.0.40
codegen_flags: <defaults>
</compile_context>

<pallas_src>
import jax
import jax.numpy as jnp
from jax.experimental import pallas as pl
from jax.experimental.pallas import tpu as pltpu

# ----------------------------- configuration --------------------------------
HP_ORDER = 2                      # harmonic polynomial order -> (L+1)^2 = 9 feats
HP_DIM = (HP_ORDER + 1) ** 2
EDGE_DIM = 7                      # size of edge attribute representation
F_IN = HP_DIM + EDGE_DIM          # MLP input features (16)
F_IN_P = F_IN + 1                 # + exp-argument column (17)
HIDDEN = 64                       # MLP hidden width
C_IN, C_OUT = 2, 3                # number of input / output fields
DELTA_IN, DELTA_OUT = 4, 4        # field sizes
D_OUT = C_OUT * C_IN * DELTA_OUT * DELTA_IN   # MLP output features (96)
D_PAD = 128                       # lane-dense padded output width
MAX_TN = 1024                     # max rows per Pallas tile


def _choose_tile(n):
    """Row-tile size: big (amortize ~0.35us/step), multiple of 8, and try to
    keep at least 2 grid steps so v7x megacore has work for both TCs."""
    tn = min(MAX_TN, max(8, -(-n // 2)))
    return ((tn + 7) // 8) * 8


# ----------------------------- plain-JAX glue --------------------------------
def harmonic_polynomials_r3(v):
    """Real harmonic polynomials on R^3 up to order 2 -> (N, 9)."""
    x, y, z = v[:, 0], v[:, 1], v[:, 2]
    r2 = x * x + y * y + z * z
    s3 = jnp.sqrt(3.0)
    h0 = jnp.ones_like(x)[:, None]
    h1 = jnp.stack([y, z, x], axis=1)
    h2 = jnp.stack(
        [s3 * x * y,
         s3 * y * z,
         0.5 * (3.0 * z * z - r2),
         s3 * x * z,
         0.5 * s3 * (x * x - y * y)],
        axis=1)
    return jnp.concatenate([h0, h1, h2], axis=1)


def iid_batchnorm(x, field_sizes, eps=1e-5):
    """IID (norm-based) batchnorm per irrep field (batch statistics)."""
    out, off = [], 0
    for s in field_sizes:
        f = x[:, off:off + s]
        if s == 1:  # trivial irrep: also center
            f = f - jnp.mean(f, axis=0, keepdims=True)
        var = jnp.mean(jnp.sum(f * f, axis=1) / s)
        out.append(f / jnp.sqrt(var + eps))
        off += s
    return jnp.concatenate(out, axis=1)


def transform_coords(coords):
    """bn_coords -> harmonic polynomials -> bn_hp (== scale_hp)."""
    # TODO(synk): escnn subgroup restriction (.restrict(sg_id)) has no Pallas/JAX
    # equivalent here; it acts as a fixed linear re-indexing and is treated as id.
    c = iid_batchnorm(coords, [3])
    hp = harmonic_polynomials_r3(c)
    hp = iid_batchnorm(hp, [1, 3, 5])
    return hp


# ----------------------------- Pallas kernel ---------------------------------
def _ik_kernel(x_ref, w1_ref, w2_ref, o_ref):
    # x_ref : (TN, F_IN_P) f32   [hp feats | edge attrs | -0.5*||c||^2*s^2]
    # w1_ref: (F_IN_P, HIDDEN) bf16  (last row zero -> exp-arg column inert)
    # w2_ref: (HIDDEN, D_PAD)  bf16  (columns permuted, He-scaled, zero-padded)
    # o_ref : (TN, D_PAD)      f32
    x = x_ref[...]
    h = jnp.dot(x.astype(jnp.bfloat16), w1_ref[...],
                preferred_element_type=jnp.float32)
    h = jnp.maximum(h, 0.0)
    y = jnp.dot(h.astype(jnp.bfloat16), w2_ref[...],
                preferred_element_type=jnp.float32)
    expf = jnp.exp(x[:, F_IN:F_IN + 1])          # (TN, 1), f32 radial factor
    o_ref[...] = y * expf


def implicit_kernel_pallas(x, w1_bf16, w2_bf16):
    """x: (N, F_IN_P) f32 -> (N, D_PAD) f32 (valid cols [0, D_OUT))."""
    n = x.shape[0]
    tn = _choose_tile(n)
    n_pad = pl.cdiv(n, tn) * tn
    if n_pad != n:
        x = jnp.pad(x, ((0, n_pad - n), (0, 0)))
    out = pl.pallas_call(
        _ik_kernel,
        out_shape=jax.ShapeDtypeStruct((n_pad, D_PAD), jnp.float32),
        grid_spec=pltpu.PrefetchScalarGridSpec(
            num_scalar_prefetch=0,
            grid=(n_pad // tn,),
            in_specs=[
                pl.BlockSpec((tn, F_IN_P), lambda i: (i, 0)),
                pl.BlockSpec((F_IN_P, HIDDEN), lambda i: (0, 0)),
                pl.BlockSpec((HIDDEN, D_PAD), lambda i: (0, 0)),
            ],
            out_specs=pl.BlockSpec((tn, D_PAD), lambda i: (i, 0)),
        ),
        compiler_params=pltpu.CompilerParams(
            dimension_semantics=("parallel",)),
    )(x, w1_bf16, w2_bf16)
    return out[:n]


# ----------------------------- module wrapper ---------------------------------
class ImplicitKernelSONPallas:
    """Synthetic JAX/Pallas re-implementation of ImplicitKernelSON."""

    def __init__(self, key):
        k1, k2, k3 = jax.random.split(key, 3)
        # TODO(synk): SONMLPTensor (equivariant tensor-product MLP) replaced by a
        # plain 2-layer MLP with matching in/out sizes; weights are synthetic.
        self.w1 = (jax.random.normal(k1, (F_IN, HIDDEN), jnp.float32)
                   * jnp.sqrt(2.0 / F_IN))
        self.w2 = (jax.random.normal(k2, (HIDDEN, D_OUT), jnp.float32)
                   * jnp.sqrt(2.0 / HIDDEN))
        # fold the (c_out, c_in, do, di) -> (c_out, do, c_in, di) permutation
        # of the filter into W2's columns.
        self.w2_perm = (self.w2
                        .reshape(HIDDEN, C_OUT, C_IN, DELTA_OUT, DELTA_IN)
                        .transpose(0, 1, 3, 2, 4)
                        .reshape(HIDDEN, D_OUT))
        # W1 padded with a zero row so the appended exp-arg column of x is
        # inert in the first matmul; stored bf16 for the MXU.
        self.w1_pad = jnp.pad(self.w1, ((0, 1), (0, 0))).astype(jnp.bfloat16)
        self.inv_scale = jnp.float32(1.0)
        self.init_factor = jnp.float32(2.0 / (C_IN * C_OUT) ** 0.5)
        # inv_std buffer: 1 / kernel_std(1000)  (channel-wise std of sampled filter)
        self.inv_std = 1.0 / self._kernel_std(k3, 1000)        # (C_OUT, C_IN)

    def _forward_core(self, coords, edge_attr, col_scale):
        x_hp = transform_coords(coords)
        # radial exponent argument uses the *raw* coords, folded with the
        # learned inv_scale on the host: -0.5 * ||c||^2 * inv_scale^2
        sqnorm = jnp.sum(coords * coords, axis=1, keepdims=True)
        exp_arg = sqnorm * (-0.5 * self.inv_scale * self.inv_scale)
        x = jnp.concatenate([x_hp, edge_attr, exp_arg], axis=1)  # (N, F_IN_P)
        # fold the He column scale into W2, pad to lane-dense 128, cast bf16
        w2_scaled = self.w2_perm * col_scale                     # (HIDDEN, D_OUT)
        w2_pad = jnp.pad(w2_scaled,
                         ((0, 0), (0, D_PAD - D_OUT))).astype(jnp.bfloat16)
        y = implicit_kernel_pallas(x, self.w1_pad, w2_pad)       # (N, D_PAD)
        y = y[:, :D_OUT]
        return y.reshape(-1, C_OUT * DELTA_OUT, C_IN * DELTA_IN)

    def _kernel_std(self, key, n_points):
        kc, ke = jax.random.split(key)
        coords = jax.random.normal(kc, (n_points, 3), jnp.float32)
        edge = jax.random.normal(ke, (n_points, EDGE_DIM), jnp.float32)
        ones = jnp.ones((1, D_OUT), jnp.float32)                  # init=False
        k = self._forward_core(coords, edge, ones)
        k = k.reshape(-1, C_OUT, DELTA_OUT, C_IN, DELTA_IN)
        return jnp.std(k, axis=(0, 2, 4), ddof=1)                 # (C_OUT, C_IN)

    def __call__(self, coords, edge_attr, init=True):
        if init:
            cs = (jnp.broadcast_to(self.inv_std[:, None, :, None],
                                   (C_OUT, DELTA_OUT, C_IN, DELTA_IN))
                  * self.init_factor).reshape(1, D_OUT)
        else:
            cs = jnp.ones((1, D_OUT), jnp.float32)
        return self._forward_core(coords, edge_attr, cs)


# --------------------------------- main ---------------------------------------
if __name__ == "__main__":
    key = jax.random.PRNGKey(0)
    k_mod, k_coords, k_edge = jax.random.split(key, 3)

    module = ImplicitKernelSONPallas(k_mod)

    N = 128
    coords = jax.random.normal(k_coords, (N, 3), jnp.float32)
    edge_attr = jax.random.normal(k_edge, (N, EDGE_DIM), jnp.float32)

    out = module(coords, edge_attr, init=True)
    out = jax.block_until_ready(out)

    assert out.shape == (N, C_OUT * DELTA_OUT, C_IN * DELTA_IN), out.shape
    assert bool(jnp.all(jnp.isfinite(out)))
    print("KERNEL_OK")
</pallas_src>

<mosaic_0001>
module attributes {stable_mosaic.version = 11 : i64} {
  func.func @_ik_kernel(%arg0: i32, %arg1: memref<504x17xf32, #tpu.memory_space<vmem>>, %arg2: memref<17x64xbf16, #tpu.memory_space<vmem>>, %arg3: memref<64x128xbf16, #tpu.memory_space<vmem>>, %arg4: memref<504x128xf32, #tpu.memory_space<vmem>>) attributes {dimension_semantics = [#tpu.dimension_semantics<parallel>], iteration_bounds = array<i64: 2>, scalar_prefetch = 0 : i64, scratch_operands = 0 : i64, tpu.core_type = #tpu.core_type<tc>, window_params = [{transform_indices = @transform_0, window_bounds = array<i64: 504, 17>}, {pipeline_mode = #tpu.pipeline_mode<synchronous>, transform_indices = @transform_1, window_bounds = array<i64: 17, 64>}, {pipeline_mode = #tpu.pipeline_mode<synchronous>, transform_indices = @transform_2, window_bounds = array<i64: 64, 128>}, {transform_indices = @transform_3, window_bounds = array<i64: 504, 128>}]} {
    %c0 = arith.constant 0 : index
    %c0_0 = arith.constant 0 : index
    %0 = vector.load %arg1[%c0, %c0_0] : memref<504x17xf32, #tpu.memory_space<vmem>>, vector<504x17xf32>
    %1 = arith.truncf %0 : vector<504x17xf32> to vector<504x17xbf16>
    %c0_1 = arith.constant 0 : index
    %c0_2 = arith.constant 0 : index
    %2 = vector.load %arg2[%c0_1, %c0_2] : memref<17x64xbf16, #tpu.memory_space<vmem>>, vector<17x64xbf16>
    %cst = arith.constant dense<0.000000e+00> : vector<504x64xf32>
    %3 = tpu.matmul %1, %2, %cst {dimension_numbers = #tpu.dot_dimension_numbers<[1], [0], [0], [1], [0, 0, 1, 1], [], []>} : vector<504x17xbf16>, vector<17x64xbf16>, vector<504x64xf32> -> vector<504x64xf32>
    %cst_3 = arith.constant 0.000000e+00 : f32
    %4 = vector.broadcast %cst_3 : f32 to vector<504x64xf32>
    %5 = arith.maximumf %3, %4 : vector<504x64xf32>
    %6 = arith.truncf %5 : vector<504x64xf32> to vector<504x64xbf16>
    %c0_4 = arith.constant 0 : index
    %c0_5 = arith.constant 0 : index
    %7 = vector.load %arg3[%c0_4, %c0_5] : memref<64x128xbf16, #tpu.memory_space<vmem>>, vector<64x128xbf16>
    %cst_6 = arith.constant dense<0.000000e+00> : vector<504x128xf32>
    %8 = tpu.matmul %6, %7, %cst_6 {dimension_numbers = #tpu.dot_dimension_numbers<[1], [0], [0], [1], [0, 0, 1, 1], [], []>} : vector<504x64xbf16>, vector<64x128xbf16>, vector<504x128xf32> -> vector<504x128xf32>
    %9 = vector.extract_strided_slice %0 {offsets = [0, 16], sizes = [504, 1], strides = [1, 1]} : vector<504x17xf32> to vector<504x1xf32>
    %10 = math.exp %9 : vector<504x1xf32>
    %11 = vector.broadcast %10 : vector<504x1xf32> to vector<504x128xf32>
    %12 = arith.mulf %8, %11 : vector<504x128xf32>
    %c0_7 = arith.constant 0 : index
    %c0_8 = arith.constant 0 : index
    %13 = vector.load %arg4[%c0_7, %c0_8] : memref<504x128xf32, #tpu.memory_space<vmem>>, vector<504x128xf32>
    tpu.vector_store %arg4[%c0_7, %c0_8], %12 {strides = array<i32>} : memref<504x128xf32, #tpu.memory_space<vmem>>, vector<504x128xf32>,
    return
  }
  func.func @transform_0(%arg0: i32) -> (i32, i32) {
    %c0_i32 = arith.constant 0 : i32
    %c0_i32_0 = arith.constant 0 : i32
    return %arg0, %c0_i32 : i32, i32
  }
  func.func @transform_1(%arg0: i32) -> (i32, i32) {
    %c0_i32 = arith.constant 0 : i32
    %c0_i32_0 = arith.constant 0 : i32
    %c0_i32_1 = arith.constant 0 : i32
    return %c0_i32, %c0_i32_0 : i32, i32
  }
  func.func @transform_2(%arg0: i32) -> (i32, i32) {
    %c0_i32 = arith.constant 0 : i32
    %c0_i32_0 = arith.constant 0 : i32
    %c0_i32_1 = arith.constant 0 : i32
    return %c0_i32, %c0_i32_0 : i32, i32
  }
  func.func @transform_3(%arg0: i32) -> (i32, i32) {
    %c0_i32 = arith.constant 0 : i32
    %c0_i32_0 = arith.constant 0 : i32
    return %arg0, %c0_i32 : i32, i32
  }
}

</mosaic_0001>

<llo_original>
// kernel: tpu_custom_call.1
$region0: #{tpu_custom_call.1}
  #allocation0 [shape = 'u32[]', space=smem, size = 0x4, offset = 0x4, fixed_abs, tag = 'smem constant byte address 0x4 - core index']
  #allocation1 [shape = 'u32[144,128]{1,0:T(1,128)}', space=vmem, size = 0x12000, scoped, tag = 'internal scratch']
  %s0 = inlined_call_operand.vmem [shape: f32[1008,17], index: 0, kind: input, shape index: {}]
  %s1 = inlined_call_operand.vmem [shape: bf16[17,64], index: 1, kind: input, shape index: {}]
  %s2 = inlined_call_operand.vmem [shape: bf16[64,128], index: 2, kind: input, shape index: {}]
  %s3 = inlined_call_operand.hbm [shape: f32[1008,128], index: 3, kind: output, shape index: {}]
  %s4 = sld [smem:[#allocation0]]
  $region45: #{tpu_custom_call.1} parent=0
    _
  %s6 = ssub.s32 1, %s4
  %s7 = scalar_select 0, %s6, %s4
  $region1: #{tpu_custom_call.1} parent=0
    #allocation2 [shape = 'u8[516096]{0}', space=vmem, size = 0x7e000, scoped, tag = 'output window, operand 0']
    #allocation3 [shape = 's32[2]{0}', space=sflag, size = 0x8, scoped, tag = 'scoped memory for tpu_custom_call.1']
    %8 = vsyncpa [#allocation3], 0
    %s9 = scalar_lea.sflag [#allocation3], 1
    %10 = vsyncpa %s9, 0
    loop: start=0, step=1, limit=4
    $region2: #{tpu_custom_call.1} parent=1 // loop_pre_header
      _
    $region3: #{tpu_custom_call.1} parent=1 // loop_header
      %s12 = sphi 0, %s16
      %p13 = scmp.ge.s32.totalorder %s12, 4
      %s22 = sphi 0, %s24
      %s25 = sphi 0, %s22
      %s26 = sphi 0, %s25
      %s42 = sphi 0, %s26
      %s46 = sphi 0, %s46
      %s48 = sphi 0, %s46
      %s49 = sphi 0, %s48
      %s63 = sphi 0, %s49
      %s67 = sphi 0, %s67
      %s69 = sphi 0, %s67
      %s70 = sphi 0, %s69
      %s84 = sphi 0, %s70
      %s90 = sphi 0, %s92
      %s93 = sphi 0, %s90
      %s94 = sphi 0, %s93
      %s110 = sphi 0, %s94
    $region4: #{tpu_custom_call.1} parent=1 // loop_header_branch
      %15 = sbr.rel (%p13) target = $region8
    $region5: #{tpu_custom_call.1} parent=1 // loop_body
      %s17 = ssub.s32 %s12, 1
      %s18 = ssub.s32 %s12, 2
      %s19 = sadd.s32 %s12, 1
      %s20 = ssub.s32 %s12, %s19
      %p21 = scmp.eq.s32.totalorder %s20, 0
      %s23 = sadd.s32 %s22, 1
      %s24 = scalar_select %p21, %s22, %s23
      %p27 = pneg %p21
      %p28 = scmp.eq.s32.totalorder %s12, 1
      %p29 = por %p27, %p28
      %p30 = scmp.ne.s32.totalorder %s22, %s25
      %p31 = scmp.eq.s32.totalorder %s12, 0
      %p32 = por %p30, %p31
      %p33 = scmp.ne.s32.totalorder %s22, %s25
      %p34 = scmp.eq.s32.totalorder %s17, 1
      %p35 = por %p33, %p34
      %p36 = scmp.ne.s32.totalorder %s25, %s26
      %p37 = scmp.eq.s32.totalorder %s17, 0
      %p38 = por %p36, %p37
      %p39 = scmp.ne.s32.totalorder %s25, %s26
      %p40 = scmp.eq.s32.totalorder %s18, 1
      %p41 = por %p39, %p40
      %p43 = scmp.ne.s32.totalorder %s26, %s42
      %p44 = scmp.eq.s32.totalorder %s18, 0
      %p45 = por %p43, %p44
      %s47 = sadd.s32 %s46, 1
      %p50 = scmp.eq.s32.totalorder %s12, 1
      %p51 = scmp.ne.s32.totalorder %s46, %s48
      %p52 = scmp.eq.s32.totalorder %s12, 0
      %p53 = por %p51, %p52
      %p54 = scmp.ne.s32.totalorder %s46, %s48
      %p55 = scmp.eq.s32.totalorder %s17, 1
      %p56 = por %p54, %p55
      %p57 = scmp.ne.s32.totalorder %s48, %s49
      %p58 = scmp.eq.s32.totalorder %s17, 0
      %p59 = por %p57, %p58
      %p60 = scmp.ne.s32.totalorder %s48, %s49
      %p61 = scmp.eq.s32.totalorder %s18, 1
      %p62 = por %p60, %p61
      %p64 = scmp.ne.s32.totalorder %s49, %s63
      %p65 = scmp.eq.s32.totalorder %s18, 0
      %p66 = por %p64, %p65
      %s68 = sadd.s32 %s67, 1
      %p71 = scmp.eq.s32.totalorder %s12, 1
      %p72 = scmp.ne.s32.totalorder %s67, %s69
      %p73 = scmp.eq.s32.totalorder %s12, 0
      %p74 = por %p72, %p73
      %p75 = scmp.ne.s32.totalorder %s67, %s69
      %p76 = scmp.eq.s32.totalorder %s17, 1
      %p77 = por %p75, %p76
      %p78 = scmp.ne.s32.totalorder %s69, %s70
      %p79 = scmp.eq.s32.totalorder %s17, 0
      %p80 = por %p78, %p79
      %p81 = scmp.ne.s32.totalorder %s69, %s70
      %p82 = scmp.eq.s32.totalorder %s18, 1
      %p83 = por %p81, %p82
      %p85 = scmp.ne.s32.totalorder %s70, %s84
      %p86 = scmp.eq.s32.totalorder %s18, 0
      %p87 = por %p85, %p86
      %s88 = ssub.s32 %s12, %s19
      %p89 = scmp.eq.s32.totalorder %s88, 0
      %s91 = sadd.s32 %s90, 1
      %s92 = scalar_select %p89, %s90, %s91
      %p95 = pneg %p89
      %p96 = scmp.eq.s32.totalorder %s12, 1
      %p97 = por %p95, %p96
      %p98 = scmp.ne.s32.totalorder %s90, %s93
      %p99 = scmp.eq.s32.totalorder %s12, 0
      %p100 = por %p98, %p99
      %p101 = scmp.ne.s32.totalorder %s90, %s93
      %p102 = scmp.eq.s32.totalorder %s17, 1
      %p103 = por %p101, %p102
      %p104 = scmp.ne.s32.totalorder %s93, %s94
      %p105 = scmp.eq.s32.totalorder %s17, 0
      %p106 = por %p104, %p105
      %p107 = scmp.ne.s32.totalorder %s93, %s94
      %p108 = scmp.eq.s32.totalorder %s18, 1
      %p109 = por %p107, %p108
      %p111 = scmp.ne.s32.totalorder %s94, %s110
      %p112 = scmp.eq.s32.totalorder %s18, 0
      %p113 = por %p111, %p112
      %p114 = scmp.le.s32.totalorder 1, %s12
      %p115 = scmp.lt.s32.totalorder %s12, 3
      %p116 = pnand %p114, %p115
      %p117 = pneg %p116
      // Predicated region
      $region9: #{tpu_custom_call.1} parent=5 // pred_check
        _
      $region10: #{tpu_custom_call.1} parent=5 // pred_check_branch
        %119 = sbr.rel (%p116) target = $region12
      $region11: #{tpu_custom_call.1} parent=5 // pred_region
        %s120 = ssub.s32 %s12, 1
        // Predicated region
        $region13: #{tpu_custom_call.1} parent=11 // pred_check
          %p121 = pneg %p59
        $region14: #{tpu_custom_call.1} parent=11 // pred_check_branch
          %123 = sbr.rel (%p121) target = $region16
        $region15: #{tpu_custom_call.1} parent=11 // pred_region
          _
        $region16: #{tpu_custom_call.1} parent=11 // pred_fallthru
          _
        // Predicated region
        $region17: #{tpu_custom_call.1} parent=11 // pred_check
          %p124 = pneg %p80
        $region18: #{tpu_custom_call.1} parent=11 // pred_check_branch
          %126 = sbr.rel (%p124) target = $region20
        $region19: #{tpu_custom_call.1} parent=11 // pred_region
          _
        $region20: #{tpu_custom_call.1} parent=11 // pred_fallthru
          _
      $region12: #{tpu_custom_call.1} parent=5 // pred_fallthru
        _
      %p127 = scmp.lt.s32.totalorder %s12, 2
      // Predicated region
      $region21: #{tpu_custom_call.1} parent=5 // pred_check
        %p128 = pneg %p127
      $region22: #{tpu_custom_call.1} parent=5 // pred_check_branch
        %130 = sbr.rel (%p128) target = $region24
      $region23: #{tpu_custom_call.1} parent=5 // pred_region
        // Predicated region
        $region25: #{tpu_custom_call.1} parent=23 // pred_check
          %p131 = pneg %p32
        $region26: #{tpu_custom_call.1} parent=23 // pred_check_branch
          %133 = sbr.rel (%p131) target = $region28
        $region27: #{tpu_custom_call.1} parent=23 // pred_region
          %s134 = smul.u32 63, %s12
          %p135 = scmp.lt.s32.totalorder %s134, 125
          %s136 = scalar_select %p135, %s134, 125
          %s137 = smul.addr %s136, 8
          %s138 = scalar_lea.vmem %s0, %s137
          %s139 = smul.u32 63, %s12
        $region28: #{tpu_custom_call.1} parent=23 // pred_fallthru
          _
      $region24: #{tpu_custom_call.1} parent=5 // pred_fallthru
        _
      %p140 = scmp.le.s32.totalorder 1, %s12
      %p141 = scmp.lt.s32.totalorder %s12, 3
      %p142 = pnand %p140, %p141
      %p143 = pneg %p142
      // Predicated region
      $region29: #{tpu_custom_call.1} parent=5 // pred_check
        _
      $region30: #{tpu_custom_call.1} parent=5 // pred_check_branch
        %145 = sbr.rel (%p142) target = $region32
      $region31: #{tpu_custom_call.1} parent=5 // pred_region
        %s146 = ssub.s32 %s12, 1
        %s147 = smul.u32 63, %s17
        %p148 = scmp.lt.s32.totalorder %s147, 125
        %s149 = scalar_select %p148, %s147, 125
        %s150 = smul.addr %s149, 8
        %s151 = scalar_lea.vmem %s0, %s150
        %p152 = pneg %p38
        %p153 = pneg %p35
        %p154 = pneg %p59
        %p155 = pneg %p56
        %p156 = pneg %p80
        %p157 = pneg %p77
        %p158 = pneg %p106
        %p159 = pneg %p103
        %s160 = sand.u32 %s93, 1
        %s161 = scalar_lea.sflag [#allocation3], %s160
        %s162 = sand.u32 %s93, 1
        %s163 = smul.addr %s162, 504
        %s164 = scalar_lea.vmem [#allocation2], %s163
        %s165 = smul.u32 63, %s17
        %p166 = scmp.lt.s32.totalorder %s165, 125
        %s167 = scalar_select %p166, %s165, 125
        %s168 = smul.addr %s167, 8
        %s169 = scalar_lea.vmem %s0, %s168
        %s170 = smul.u32 63, %s17
        %s171 = smul.u32 63, %s17
        %v173 = vld [vmem:[%s169] sm:$0xff]
        %v174 = vld [vmem:[%s169 + $0x8] sm:$0xff]
        %v175 = vld [vmem:[%s169 + $0x10] sm:$0xff]
        %v176 = vld [vmem:[%s169 + $0x18] sm:$0xff]
        %v177 = vld [vmem:[%s169 + $0x20] sm:$0xff]
        %v178 = vld [vmem:[%s169 + $0x28] sm:$0xff]
        %v179 = vld [vmem:[%s169 + $0x30] sm:$0xff]
        %v180 = vld [vmem:[%s169 + $0x38] sm:$0xff]
        %v181 = vld [vmem:[%s169 + $0x40] sm:$0xff]
        %v182 = vld [vmem:[%s169 + $0x48] sm:$0xff]
        %v183 = vld [vmem:[%s169 + $0x50] sm:$0xff]
        %v184 = vld [vmem:[%s169 + $0x58] sm:$0xff]
        %v185 = vld [vmem:[%s169 + $0x60] sm:$0xff]
        %v186 = vld [vmem:[%s169 + $0x68] sm:$0xff]
        %v187 = vld [vmem:[%s169 + $0x70] sm:$0xff]
        %v188 = vld [vmem:[%s169 + $0x78] sm:$0xff]
        %v189 = vld [vmem:[%s169 + $0x80] sm:$0xff]
        %v190 = vld [vmem:[%s169 + $0x88] sm:$0xff]
        %v191 = vld [vmem:[%s169 + $0x90] sm:$0xff]
        %v192 = vld [vmem:[%s169 + $0x98] sm:$0xff]
        %v193 = vld [vmem:[%s169 + $0xa0] sm:$0xff]
        %v194 = vld [vmem:[%s169 + $0xa8] sm:$0xff]
        %v195 = vld [vmem:[%s169 + $0xb0] sm:$0xff]
        %v196 = vld [vmem:[%s169 + $0xb8] sm:$0xff]
        %v197 = vld [vmem:[%s169 + $0xc0] sm:$0xff]
        %v198 = vld [vmem:[%s169 + $0xc8] sm:$0xff]
        %v199 = vld [vmem:[%s169 + $0xd0] sm:$0xff]
        %v200 = vld [vmem:[%s169 + $0xd8] sm:$0xff]
        %v201 = vld [vmem:[%s169 + $0xe0] sm:$0xff]
        %v202 = vld [vmem:[%s169 + $0xe8] sm:$0xff]
        %v203 = vld [vmem:[%s169 + $0xf0] sm:$0xff]
        %v204 = vld [vmem:[%s169 + $0xf8] sm:$0xff]
        %v205 = vld [vmem:[%s169 + $0x100] sm:$0xff]
        %v206 = vld [vmem:[%s169 + $0x108] sm:$0xff]
        %v207 = vld [vmem:[%s169 + $0x110] sm:$0xff]
        %v208 = vld [vmem:[%s169 + $0x118] sm:$0xff]
        %v209 = vld [vmem:[%s169 + $0x120] sm:$0xff]
        %v210 = vld [vmem:[%s169 + $0x128] sm:$0xff]
        %v211 = vld [vmem:[%s169 + $0x130] sm:$0xff]
        %v212 = vld [vmem:[%s169 + $0x138] sm:$0xff]
        %v213 = vld [vmem:[%s169 + $0x140] sm:$0xff]
        %v214 = vld [vmem:[%s169 + $0x148] sm:$0xff]
        %v215 = vld [vmem:[%s169 + $0x150] sm:$0xff]
        %v216 = vld [vmem:[%s169 + $0x158] sm:$0xff]
        %v217 = vld [vmem:[%s169 + $0x160] sm:$0xff]
        %v218 = vld [vmem:[%s169 + $0x168] sm:$0xff]
        %v219 = vld [vmem:[%s169 + $0x170] sm:$0xff]
        %v220 = vld [vmem:[%s169 + $0x178] sm:$0xff]
        %v221 = vld [vmem:[%s169 + $0x180] sm:$0xff]
        %v222 = vld [vmem:[%s169 + $0x188] sm:$0xff]
        %v223 = vld [vmem:[%s169 + $0x190] sm:$0xff]
        %v224 = vld [vmem:[%s169 + $0x198] sm:$0xff]
        %v225 = vld [vmem:[%s169 + $0x1a0] sm:$0xff]
        %v226 = vld [vmem:[%s169 + $0x1a8] sm:$0xff]
        %v227 = vld [vmem:[%s169 + $0x1b0] sm:$0xff]
        %v228 = vld [vmem:[%s169 + $0x1b8] sm:$0xff]
        %v229 = vld [vmem:[%s169 + $0x1c0] sm:$0xff]
        %v230 = vld [vmem:[%s169 + $0x1c8] sm:$0xff]
        %v231 = vld [vmem:[%s169 + $0x1d0] sm:$0xff]
        %v232 = vld [vmem:[%s169 + $0x1d8] sm:$0xff]
        %v233 = vld [vmem:[%s169 + $0x1e0] sm:$0xff]
        %v234 = vld [vmem:[%s169 + $0x1e8] sm:$0xff]
        %v235 = vld [vmem:[%s169 + $0x1f0] sm:$0xff]
        %v236 = vpack.c.bf16 %v174, %v173
        %v237 = vpack.c.bf16 %v176, %v175
        %v238 = vpack.c.bf16 %v178, %v177
        %v239 = vpack.c.bf16 %v180, %v179
        %v240 = vpack.c.bf16 %v182, %v181
        %v241 = vpack.c.bf16 %v184, %v183
        %v242 = vpack.c.bf16 %v186, %v185
        %v243 = vpack.c.bf16 %v188, %v187
        %v244 = vpack.c.bf16 %v190, %v189
        %v245 = vpack.c.bf16 %v192, %v191
        %v246 = vpack.c.bf16 %v194, %v193
        %v247 = vpack.c.bf16 %v196, %v195
        %v248 = vpack.c.bf16 %v198, %v197
        %v249 = vpack.c.bf16 %v200, %v199
        %v250 = vpack.c.bf16 %v202, %v201
        %v251 = vpack.c.bf16 %v204, %v203
        %v252 = vpack.c.bf16 %v206, %v205
        %v253 = vpack.c.bf16 %v208, %v207
        %v254 = vpack.c.bf16 %v210, %v209
        %v255 = vpack.c.bf16 %v212, %v211
        %v256 = vpack.c.bf16 %v214, %v213
        %v257 = vpack.c.bf16 %v216, %v215
        %v258 = vpack.c.bf16 %v218, %v217
        %v259 = vpack.c.bf16 %v220, %v219
        %v260 = vpack.c.bf16 %v222, %v221
        %v261 = vpack.c.bf16 %v224, %v223
        %v262 = vpack.c.bf16 %v226, %v225
        %v263 = vpack.c.bf16 %v228, %v227
        %v264 = vpack.c.bf16 %v230, %v229
        %v265 = vpack.c.bf16 %v232, %v231
        %v266 = vpack.c.bf16 %v234, %v233
        %v267 = vpack.c.bf16 %v235, %v235
        %v268 = vld [vmem:[%s1] sm:$0xf]
        %v269 = vld [vmem:[%s1 + $0x4] sm:$0xf]
        %v270 = vld [vmem:[%s1 + $0x8] sm:$0x1]
        %v274 = vunpack.c.l.b16 %v268
        %v275 = vunpack.c.l.b16 %v269
        %v276 = vunpack.c.l.b16 %v270
        %v277 = vpack.c.b16 %v275, %v274
        %v278 = vpack.c.b16 %v276, %v276
        %vm280 = vcmask 138240
        %v282 = vsel %vm280, %v236, 0
        %v285 = vsel %vm280, %v237, 0
        %v288 = vsel %vm280, %v238, 0
        %v291 = vsel %vm280, %v239, 0
        %v294 = vsel %vm280, %v240, 0
        %v297 = vsel %vm280, %v241, 0
        %v300 = vsel %vm280, %v242, 0
        %v303 = vsel %vm280, %v243, 0
        %v306 = vsel %vm280, %v244, 0
        %v309 = vsel %vm280, %v245, 0
        %v312 = vsel %vm280, %v246, 0
        %v315 = vsel %vm280, %v247, 0
        %v318 = vsel %vm280, %v248, 0
        %v321 = vsel %vm280, %v249, 0
        %v324 = vsel %vm280, %v250, 0
        %v327 = vsel %vm280, %v251, 0
        %v330 = vsel %vm280, %v252, 0
        %v333 = vsel %vm280, %v253, 0
        %v336 = vsel %vm280, %v254, 0
        %v339 = vsel %vm280, %v255, 0
        %v342 = vsel %vm280, %v256, 0
        %v345 = vsel %vm280, %v257, 0
        %v348 = vsel %vm280, %v258, 0
        %v351 = vsel %vm280, %v259, 0
        %v354 = vsel %vm280, %v260, 0
        %v357 = vsel %vm280, %v261, 0
        %v360 = vsel %vm280, %v262, 0
        %v363 = vsel %vm280, %v263, 0
        %v366 = vsel %vm280, %v264, 0
        %v369 = vsel %vm280, %v265, 0
        %v372 = vsel %vm280, %v266, 0
        %v375 = vsel %vm280, %v267, 0
        %vm377 = vcmask 1040384
        %v378 = vsel 0, 4294967295, 65535
        %v379 = vsel %vm377, %v378, 0
        %v381 = vand.u32 %v278, %v379
        %383 = vmatprep.subr.bf16.mxu0 0
        %384 = vmatpush1.bf16.msra.mxu0 %v277
        %385 = vmatprep.subr.bf16.mxu0 0
        %386 = vmatpush1.bf16.msra.mxu0 %v381
        %387 = vmatprep.subr.bf16.mxu0 0
        %388 = vmatpush1.bf16.msra.mxu0 0
        %389 = vmatprep.subr.bf16.mxu0 0
        %390 = vmatpush1.bf16.msra.mxu0 0
        %391 = vmatprep.subr.bf16.mxu0 0
        %392 = vmatpush1.bf16.msra.mxu0 0
        %393 = vmatprep.subr.bf16.mxu0 0
        %394 = vmatpush1.bf16.msra.mxu0 0
        %395 = vmatprep.subr.bf16.mxu0 0
        %396 = vmatpush1.bf16.msra.mxu0 0
        %397 = vmatprep.subr.bf16.mxu0 0
        %398 = vmatpush1.bf16.msra.mxu0 0
        %399 = vmatprep.subr.bf16.mxu0 0
        %400 = vmatpush1.bf16.msra.mxu0 0
        %401 = vmatprep.subr.bf16.mxu0 0
        %402 = vmatpush1.bf16.msra.mxu0 0
        %403 = vmatprep.subr.bf16.mxu0 0
        %404 = vmatpush1.bf16.msra.mxu0 0
        %405 = vmatprep.subr.bf16.mxu0 0
        %406 = vmatpush1.bf16.msra.mxu0 0
        %407 = vmatprep.subr.bf16.mxu0 0
        %408 = vmatpush1.bf16.msra.mxu0 0
        %409 = vmatprep.subr.bf16.mxu0 0
        %410 = vmatpush1.bf16.msra.mxu0 0
        %411 = vmatprep.subr.bf16.mxu0 0
        %412 = vmatpush1.bf16.msra.mxu0 0
        %413 = vmatprep.subr.bf16.mxu0 0
        %414 = vmatpush1.bf16.msra.mxu0 0
        %415 = vmatprep.mubr.bf16.mxu0 0
        %416 = vmatmul.mubr.bf16.gmra.mrb[0].mxu0 %v282
        %v417 = vpop.f32.mrb[0].mxu0
        %v418 = vadd.f32 0.0, %v417
        %v419 = vpop.f32.mrb[0].mxu0
        %v420 = vpop.f32.mrb[0].mxu0
        %v421 = vadd.f32 0.0, %v420
        %v422 = vpop.f32.mrb[0].mxu0
        %423 = vmatprep.mubr.bf16.mxu0 0
        %424 = vmatmul.mubr.bf16.gmra.mrb[0].mxu0 %v285
        %v425 = vpop.f32.mrb[0].mxu0
        %v426 = vadd.f32 0.0, %v425
        %v427 = vpop.f32.mrb[0].mxu0
        %v428 = vpop.f32.mrb[0].mxu0
        %v429 = vadd.f32 0.0, %v428
        %v430 = vpop.f32.mrb[0].mxu0
        %431 = vmatprep.mubr.bf16.mxu0 0
        %432 = vmatmul.mubr.bf16.gmra.mrb[0].mxu0 %v288
        %v433 = vpop.f32.mrb[0].mxu0
        %v434 = vadd.f32 0.0, %v433
        %v435 = vpop.f32.mrb[0].mxu0
        %v436 = vpop.f32.mrb[0].mxu0
        %v437 = vadd.f32 0.0, %v436
        %v438 = vpop.f32.mrb[0].mxu0
        %439 = vmatprep.mubr.bf16.mxu0 0
        %440 = vmatmul.mubr.bf16.gmra.mrb[0].mxu0 %v291
        %v441 = vpop.f32.mrb[0].mxu0
        %v442 = vadd.f32 0.0, %v441
        %v443 = vpop.f32.mrb[0].mxu0
        %v444 = vpop.f32.mrb[0].mxu0
        %v445 = vadd.f32 0.0, %v444
        %v446 = vpop.f32.mrb[0].mxu0
        %447 = vmatprep.mubr.bf16.mxu0 0
        %448 = vmatmul.mubr.bf16.gmra.mrb[0].mxu0 %v294
        %v449 = vpop.f32.mrb[0].mxu0
        %v450 = vadd.f32 0.0, %v449
        %v451 = vpop.f32.mrb[0].mxu0
        %v452 = vpop.f32.mrb[0].mxu0
        %v453 = vadd.f32 0.0, %v452
        %v454 = vpop.f32.mrb[0].mxu0
        %455 = vmatprep.mubr.bf16.mxu0 0
        %456 = vmatmul.mubr.bf16.gmra.mrb[0].mxu0 %v297
        %v457 = vpop.f32.mrb[0].mxu0
        %v458 = vadd.f32 0.0, %v457
        %v459 = vpop.f32.mrb[0].mxu0
        %v460 = vpop.f32.mrb[0].mxu0
        %v461 = vadd.f32 0.0, %v460
        %v462 = vpop.f32.mrb[0].mxu0
        %463 = vmatprep.mubr.bf16.mxu0 0
        %464 = vmatmul.mubr.bf16.gmra.mrb[0].mxu0 %v300
        %v465 = vpop.f32.mrb[0].mxu0
        %v466 = vadd.f32 0.0, %v465
        %v467 = vpop.f32.mrb[0].mxu0
        %v468 = vpop.f32.mrb[0].mxu0
        %v469 = vadd.f32 0.0, %v468
        %v470 = vpop.f32.mrb[0].mxu0
        %471 = vmatprep.mubr.bf16.mxu0 0
        %472 = vmatmul.mubr.bf16.gmra.mrb[0].mxu0 %v303
        %v473 = vpop.f32.mrb[0].mxu0
        %v474 = vadd.f32 0.0, %v473
        %v475 = vpop.f32.mrb[0].mxu0
        %v476 = vpop.f32.mrb[0].mxu0
        %v477 = vadd.f32 0.0, %v476
        %v478 = vpop.f32.mrb[0].mxu0
        %479 = vmatprep.mubr.bf16.mxu0 0
        %480 = vmatmul.mubr.bf16.gmra.mrb[0].mxu0 %v306
        %v481 = vpop.f32.mrb[0].mxu0
        %v482 = vadd.f32 0.0, %v481
        %v483 = vpop.f32.mrb[0].mxu0
        %v484 = vpop.f32.mrb[0].mxu0
        %v485 = vadd.f32 0.0, %v484
        %v486 = vpop.f32.mrb[0].mxu0
        %487 = vmatprep.mubr.bf16.mxu0 0
        %488 = vmatmul.mubr.bf16.gmra.mrb[0].mxu0 %v309
        %v489 = vpop.f32.mrb[0].mxu0
        %v490 = vadd.f32 0.0, %v489
        %v491 = vpop.f32.mrb[0].mxu0
        %v492 = vpop.f32.mrb[0].mxu0
        %v493 = vadd.f32 0.0, %v492
        %v494 = vpop.f32.mrb[0].mxu0
        %495 = vmatprep.mubr.bf16.mxu0 0
        %496 = vmatmul.mubr.bf16.gmra.mrb[0].mxu0 %v312
        %v497 = vpop.f32.mrb[0].mxu0
        %v498 = vadd.f32 0.0, %v497
        %v499 = vpop.f32.mrb[0].mxu0
        %v500 = vpop.f32.mrb[0].mxu0
        %v501 = vadd.f32 0.0, %v500
        %v502 = vpop.f32.mrb[0].mxu0
        %503 = vmatprep.mubr.bf16.mxu0 0
        %504 = vmatmul.mubr.bf16.gmra.mrb[0].mxu0 %v315
        %v505 = vpop.f32.mrb[0].mxu0
        %v506 = vadd.f32 0.0, %v505
        %v507 = vpop.f32.mrb[0].mxu0
        %v508 = vpop.f32.mrb[0].mxu0
        %v509 = vadd.f32 0.0, %v508
        %v510 = vpop.f32.mrb[0].mxu0
        %511 = vmatprep.mubr.bf16.mxu0 0
        %512 = vmatmul.mubr.bf16.gmra.mrb[0].mxu0 %v318
        %v513 = vpop.f32.mrb[0].mxu0
        %v514 = vadd.f32 0.0, %v513
        %v515 = vpop.f32.mrb[0].mxu0
        %v516 = vpop.f32.mrb[0].mxu0
        %v517 = vadd.f32 0.0, %v516
        %v518 = vpop.f32.mrb[0].mxu0
        %519 = vmatprep.mubr.bf16.mxu0 0
        %520 = vmatmul.mubr.bf16.gmra.mrb[0].mxu0 %v321
        %v521 = vpop.f32.mrb[0].mxu0
        %v522 = vadd.f32 0.0, %v521
        %v523 = vpop.f32.mrb[0].mxu0
        %v524 = vpop.f32.mrb[0].mxu0
        %v525 = vadd.f32 0.0, %v524
        %v526 = vpop.f32.mrb[0].mxu0
        %527 = vmatprep.mubr.bf16.mxu0 0
        %528 = vmatmul.mubr.bf16.gmra.mrb[0].mxu0 %v324
        %v529 = vpop.f32.mrb[0].mxu0
        %v530 = vadd.f32 0.0, %v529
        %v531 = vpop.f32.mrb[0].mxu0
        %v532 = vpop.f32.mrb[0].mxu0
        %v533 = vadd.f32 0.0, %v532
        %v534 = vpop.f32.mrb[0].mxu0
        %535 = vmatprep.mubr.bf16.mxu0 0
        %536 = vmatmul.mubr.bf16.gmra.mrb[0].mxu0 %v327
        %v537 = vpop.f32.mrb[0].mxu0
        %v538 = vadd.f32 0.0, %v537
        %v539 = vpop.f32.mrb[0].mxu0
        %v540 = vpop.f32.mrb[0].mxu0
        %v541 = vadd.f32 0.0, %v540
        %v542 = vpop.f32.mrb[0].mxu0
        %543 = vmatprep.mubr.bf16.mxu0 0
        %544 = vmatmul.mubr.bf16.gmra.mrb[0].mxu0 %v330
        %v545 = vpop.f32.mrb[0].mxu0
        %v546 = vadd.f32 0.0, %v545
        %v547 = vpop.f32.mrb[0].mxu0
        %v548 = vpop.f32.mrb[0].mxu0
        %v549 = vadd.f32 0.0, %v548
        %v550 = vpop.f32.mrb[0].mxu0
        %551 = vmatprep.mubr.bf16.mxu0 0
        %552 = vmatmul.mubr.bf16.gmra.mrb[0].mxu0 %v333
        %v553 = vpop.f32.mrb[0].mxu0
        %v554 = vadd.f32 0.0, %v553
        %v555 = vpop.f32.mrb[0].mxu0
        %v556 = vpop.f32.mrb[0].mxu0
        %v557 = vadd.f32 0.0, %v556
        %v558 = vpop.f32.mrb[0].mxu0
        %559 = vmatprep.mubr.bf16.mxu0 0
        %560 = vmatmul.mubr.bf16.gmra.mrb[0].mxu0 %v336
        %v561 = vpop.f32.mrb[0].mxu0
        %v562 = vadd.f32 0.0, %v561
        %v563 = vpop.f32.mrb[0].mxu0
        %v564 = vpop.f32.mrb[0].mxu0
        %v565 = vadd.f32 0.0, %v564
        %v566 = vpop.f32.mrb[0].mxu0
        %567 = vmatprep.mubr.bf16.mxu0 0
        %568 = vmatmul.mubr.bf16.gmra.mrb[0].mxu0 %v339
        %v569 = vpop.f32.mrb[0].mxu0
        %v570 = vadd.f32 0.0, %v569
        %v571 = vpop.f32.mrb[0].mxu0
        %v572 = vpop.f32.mrb[0].mxu0
        %v573 = vadd.f32 0.0, %v572
        %v574 = vpop.f32.mrb[0].mxu0
        %575 = vmatprep.mubr.bf16.mxu0 0
        %576 = vmatmul.mubr.bf16.gmra.mrb[0].mxu0 %v342
        %v577 = vpop.f32.mrb[0].mxu0
        %v578 = vadd.f32 0.0, %v577
        %v579 = vpop.f32.mrb[0].mxu0
        %v580 = vpop.f32.mrb[0].mxu0
        %v581 = vadd.f32 0.0, %v580
        %v582 = vpop.f32.mrb[0].mxu0
        %583 = vmatprep.mubr.bf16.mxu0 0
        %584 = vmatmul.mubr.bf16.gmra.mrb[0].mxu0 %v345
        %v585 = vpop.f32.mrb[0].mxu0
        %v586 = vadd.f32 0.0, %v585
        %v587 = vpop.f32.mrb[0].mxu0
        %v588 = vpop.f32.mrb[0].mxu0
        %v589 = vadd.f32 0.0, %v588
        %v590 = vpop.f32.mrb[0].mxu0
        %591 = vmatprep.mubr.bf16.mxu0 0
        %592 = vmatmul.mubr.bf16.gmra.mrb[0].mxu0 %v348
        %v593 = vpop.f32.mrb[0].mxu0
        %v594 = vadd.f32 0.0, %v593
        %v595 = vpop.f32.mrb[0].mxu0
        %v596 = vpop.f32.mrb[0].mxu0
        %v597 = vadd.f32 0.0, %v596
        %v598 = vpop.f32.mrb[0].mxu0
        %599 = vmatprep.mubr.bf16.mxu0 0
        %600 = vmatmul.mubr.bf16.gmra.mrb[0].mxu0 %v351
        %v601 = vpop.f32.mrb[0].mxu0
        %v602 = vadd.f32 0.0, %v601
        %v603 = vpop.f32.mrb[0].mxu0
        %v604 = vpop.f32.mrb[0].mxu0
        %v605 = vadd.f32 0.0, %v604
        %v606 = vpop.f32.mrb[0].mxu0
        %607 = vmatprep.mubr.bf16.mxu0 0
        %608 = vmatmul.mubr.bf16.gmra.mrb[0].mxu0 %v354
        %v609 = vpop.f32.mrb[0].mxu0
        %v610 = vadd.f32 0.0, %v609
        %v611 = vpop.f32.mrb[0].mxu0
        %v612 = vpop.f32.mrb[0].mxu0
        %v613 = vadd.f32 0.0, %v612
        %v614 = vpop.f32.mrb[0].mxu0
        %615 = vmatprep.mubr.bf16.mxu0 0
        %616 = vmatmul.mubr.bf16.gmra.mrb[0].mxu0 %v357
        %v617 = vpop.f32.mrb[0].mxu0
        %v618 = vadd.f32 0.0, %v617
        %v619 = vpop.f32.mrb[0].mxu0
        %v620 = vpop.f32.mrb[0].mxu0
        %v621 = vadd.f32 0.0, %v620
        %v622 = vpop.f32.mrb[0].mxu0
        %623 = vmatprep.mubr.bf16.mxu0 0
        %624 = vmatmul.mubr.bf16.gmra.mrb[0].mxu0 %v360
        %v625 = vpop.f32.mrb[0].mxu0
        %v626 = vadd.f32 0.0, %v625
        %v627 = vpop.f32.mrb[0].mxu0
        %v628 = vpop.f32.mrb[0].mxu0
        %v629 = vadd.f32 0.0, %v628
        %v630 = vpop.f32.mrb[0].mxu0
        %631 = vmatprep.mubr.bf16.mxu0 0
        %632 = vmatmul.mubr.bf16.gmra.mrb[0].mxu0 %v363
        %v633 = vpop.f32.mrb[0].mxu0
        %v634 = vadd.f32 0.0, %v633
        %v635 = vpop.f32.mrb[0].mxu0
        %v636 = vpop.f32.mrb[0].mxu0
        %v637 = vadd.f32 0.0, %v636
        %v638 = vpop.f32.mrb[0].mxu0
        %639 = vmatprep.mubr.bf16.mxu0 0
        %640 = vmatmul.mubr.bf16.gmra.mrb[0].mxu0 %v366
        %v641 = vpop.f32.mrb[0].mxu0
        %v642 = vadd.f32 0.0, %v641
        %v643 = vpop.f32.mrb[0].mxu0
        %v644 = vpop.f32.mrb[0].mxu0
        %v645 = vadd.f32 0.0, %v644
        %v646 = vpop.f32.mrb[0].mxu0
        %647 = vmatprep.mubr.bf16.mxu0 0
        %648 = vmatmul.mubr.bf16.gmra.mrb[0].mxu0 %v369
        %v649 = vpop.f32.mrb[0].mxu0
        %v650 = vadd.f32 0.0, %v649
        %v651 = vpop.f32.mrb[0].mxu0
        %v652 = vpop.f32.mrb[0].mxu0
        %v653 = vadd.f32 0.0, %v652
        %v654 = vpop.f32.mrb[0].mxu0
        %655 = vmatprep.mubr.bf16.mxu0 0
        %656 = vmatmul.mubr.bf16.gmra.mrb[0].mxu0 %v372
        %v657 = vpop.f32.mrb[0].mxu0
        %v658 = vadd.f32 0.0, %v657
        %v659 = vpop.f32.mrb[0].mxu0
        %v660 = vpop.f32.mrb[0].mxu0
        %v661 = vadd.f32 0.0, %v660
        %v662 = vpop.f32.mrb[0].mxu0
        %663 = vmatprep.mubr.bf16.mxu0 0
        %664 = vmatmul.mubr.bf16.gmra.mrb[0].mxu0 %v375
        %v665 = vpop.f32.mrb[0].mxu0
        %v666 = vadd.f32 0.0, %v665
        %v667 = vpop.f32.mrb[0].mxu0
        %v668 = vpop.f32.mrb[0].mxu0
        %v669 = vpop.f32.mrb[0].mxu0
        %670 = vdwg.mxu0
        %v671 = vmax.f32 %v418, 0.0
        %v672 = vmax.f32 %v421, 0.0
        %v673 = vmax.f32 %v426, 0.0
        %v674 = vmax.f32 %v429, 0.0
        %v675 = vmax.f32 %v434, 0.0
        %v676 = vmax.f32 %v437, 0.0
        %v677 = vmax.f32 %v442, 0.0
        %v678 = vmax.f32 %v445, 0.0
        %v679 = vmax.f32 %v450, 0.0
        %v680 = vmax.f32 %v453, 0.0
        %v681 = vmax.f32 %v458, 0.0
        %v682 = vmax.f32 %v461, 0.0
        %v683 = vmax.f32 %v466, 0.0
        %v684 = vmax.f32 %v469, 0.0
        %v685 = vmax.f32 %v474, 0.0
        %v686 = vmax.f32 %v477, 0.0
        %v687 = vmax.f32 %v482, 0.0
        %v688 = vmax.f32 %v485, 0.0
        %v689 = vmax.f32 %v490, 0.0
        %v690 = vmax.f32 %v493, 0.0
        %v691 = vmax.f32 %v498, 0.0
        %v692 = vmax.f32 %v501, 0.0
        %v693 = vmax.f32 %v506, 0.0
        %v694 = vmax.f32 %v509, 0.0
        %v695 = vmax.f32 %v514, 0.0
        %v696 = vmax.f32 %v517, 0.0
        %v697 = vmax.f32 %v522, 0.0
        %v698 = vmax.f32 %v525, 0.0
        %v699 = vmax.f32 %v530, 0.0
        %v700 = vmax.f32 %v533, 0.0
        %v701 = vmax.f32 %v538, 0.0
        %v702 = vmax.f32 %v541, 0.0
        %v703 = vmax.f32 %v546, 0.0
        %v704 = vmax.f32 %v549, 0.0
        %v705 = vmax.f32 %v554, 0.0
        %v706 = vmax.f32 %v557, 0.0
        %v707 = vmax.f32 %v562, 0.0
        %v708 = vmax.f32 %v565, 0.0
        %v709 = vmax.f32 %v570, 0.0
        %v710 = vmax.f32 %v573, 0.0
        %v711 = vmax.f32 %v578, 0.0
        %v712 = vmax.f32 %v581, 0.0
        %v713 = vmax.f32 %v586, 0.0
        %v714 = vmax.f32 %v589, 0.0
        %v715 = vmax.f32 %v594, 0.0
        %v716 = vmax.f32 %v597, 0.0
        %v717 = vmax.f32 %v602, 0.0
        %v718 = vmax.f32 %v605, 0.0
        %v719 = vmax.f32 %v610, 0.0
        %v720 = vmax.f32 %v613, 0.0
        %v721 = vmax.f32 %v618, 0.0
        %v722 = vmax.f32 %v621, 0.0
        %v723 = vmax.f32 %v626, 0.0
        %v724 = vmax.f32 %v629, 0.0
        %v725 = vmax.f32 %v634, 0.0
        %v726 = vmax.f32 %v637, 0.0
        %v727 = vmax.f32 %v642, 0.0
        %v728 = vmax.f32 %v645, 0.0
        %v729 = vmax.f32 %v650, 0.0
        %v730 = vmax.f32 %v653, 0.0
        %v731 = vmax.f32 %v658, 0.0
        %v732 = vmax.f32 %v661, 0.0
        %v733 = vmax.f32 %v666, 0.0
        %v734 = vpack.c.bf16 %v672, %v671
        %v735 = vpack.c.bf16 %v674, %v673
        %v736 = vpack.c.bf16 %v676, %v675
        %v737 = vpack.c.bf16 %v678, %v677
        %v738 = vpack.c.bf16 %v680, %v679
        %v739 = vpack.c.bf16 %v682, %v681
        %v740 = vpack.c.bf16 %v684, %v683
        %v741 = vpack.c.bf16 %v686, %v685
        %v742 = vpack.c.bf16 %v688, %v687
        %v743 = vpack.c.bf16 %v690, %v689
        %v744 = vpack.c.bf16 %v692, %v691
        %v745 = vpack.c.bf16 %v694, %v693
        %v746 = vpack.c.bf16 %v696, %v695
        %v747 = vpack.c.bf16 %v698, %v697
        %v748 = vpack.c.bf16 %v700, %v699
        %v749 = vpack.c.bf16 %v702, %v701
        %v750 = vpack.c.bf16 %v704, %v703
        %v751 = vpack.c.bf16 %v706, %v705
        %v752 = vpack.c.bf16 %v708, %v707
        %v753 = vpack.c.bf16 %v710, %v709
        %v754 = vpack.c.bf16 %v712, %v711
        %v755 = vpack.c.bf16 %v714, %v713
        %v756 = vpack.c.bf16 %v716, %v715
        %v757 = vpack.c.bf16 %v718, %v717
        %v758 = vpack.c.bf16 %v720, %v719
        %v759 = vpack.c.bf16 %v722, %v721
        %v760 = vpack.c.bf16 %v724, %v723
        %v761 = vpack.c.bf16 %v726, %v725
        %v762 = vpack.c.bf16 %v728, %v727
        %v763 = vpack.c.bf16 %v730, %v729
        %v764 = vpack.c.bf16 %v732, %v731
        %v765 = vpack.c.bf16 %v733, %v733
        %v766 = vld [vmem:[%s2] sm:$0xf]
        %v767 = vld [vmem:[%s2 + $0x4] sm:$0xf]
        %v768 = vld [vmem:[%s2 + $0x8] sm:$0xf]
        %v769 = vld [vmem:[%s2 + $0xc] sm:$0xf]
        %v770 = vld [vmem:[%s2 + $0x10] sm:$0xf]
        %v771 = vld [vmem:[%s2 + $0x14] sm:$0xf]
        %v772 = vld [vmem:[%s2 + $0x18] sm:$0xf]
        %v773 = vld [vmem:[%s2 + $0x1c] sm:$0xf]
        %v782 = vunpack.c.l.b16 %v766
        %v783 = vunpack.c.l.b16 %v767
        %v784 = vunpack.c.l.b16 %v768
        %v785 = vunpack.c.l.b16 %v769
        %v786 = vunpack.c.l.b16 %v770
        %v787 = vunpack.c.l.b16 %v771
        %v788 = vunpack.c.l.b16 %v772
        %v789 = vunpack.c.l.b16 %v773
        %v790 = vpack.c.b16 %v783, %v782
        %v791 = vpack.c.b16 %v785, %v784
        %v792 = vpack.c.b16 %v787, %v786
        %v793 = vpack.c.b16 %v789, %v788
        %vm798 = vcmask 523264
        %v800 = vsel %vm798, %v734, 0
        %v803 = vsel %vm798, %v735, 0
        %v806 = vsel %vm798, %v736, 0
        %v809 = vsel %vm798, %v737, 0
        %v812 = vsel %vm798, %v738, 0
        %v815 = vsel %vm798, %v739, 0
        %v818 = vsel %vm798, %v740, 0
        %v821 = vsel %vm798, %v741, 0
        %v824 = vsel %vm798, %v742, 0
        %v827 = vsel %vm798, %v743, 0
        %v830 = vsel %vm798, %v744, 0
        %v833 = vsel %vm798, %v745, 0
        %v836 = vsel %vm798, %v746, 0
        %v839 = vsel %vm798, %v747, 0
        %v842 = vsel %vm798, %v748, 0
        %v845 = vsel %vm798, %v749, 0
        %v848 = vsel %vm798, %v750, 0
        %v851 = vsel %vm798, %v751, 0
        %v854 = vsel %vm798, %v752, 0
        %v857 = vsel %vm798, %v753, 0
        %v860 = vsel %vm798, %v754, 0
        %v863 = vsel %vm798, %v755, 0
        %v866 = vsel %vm798, %v756, 0
        %v869 = vsel %vm798, %v757, 0
        %v872 = vsel %vm798, %v758, 0
        %v875 = vsel %vm798, %v759, 0
        %v878 = vsel %vm798, %v760, 0
        %v881 = vsel %vm798, %v761, 0
        %v884 = vsel %vm798, %v762, 0
        %v887 = vsel %vm798, %v763, 0
        %v890 = vsel %vm798, %v764, 0
        %v893 = vsel %vm798, %v765, 0
        %895 = vmatprep.subr.bf16.mxu0 0
        %896 = vmatpush1.bf16.msra.mxu0 %v790
        %897 = vmatprep.subr.bf16.mxu0 0
        %898 = vmatpush1.bf16.msra.mxu0 %v791
        %899 = vmatprep.subr.bf16.mxu0 0
        %900 = vmatpush1.bf16.msra.mxu0 %v792
        %901 = vmatprep.subr.bf16.mxu0 0
        %902 = vmatpush1.bf16.msra.mxu0 %v793
        %903 = vmatprep.subr.bf16.mxu0 0
        %904 = vmatpush1.bf16.msra.mxu0 0
        %905 = vmatprep.subr.bf16.mxu0 0
        %906 = vmatpush1.bf16.msra.mxu0 0
        %907 = vmatprep.subr.bf16.mxu0 0
        %908 = vmatpush1.bf16.msra.mxu0 0
        %909 = vmatprep.subr.bf16.mxu0 0
        %910 = vmatpush1.bf16.msra.mxu0 0
        %911 = vmatprep.subr.bf16.mxu0 0
        %912 = vmatpush1.bf16.msra.mxu0 0
        %913 = vmatprep.subr.bf16.mxu0 0
        %914 = vmatpush1.bf16.msra.mxu0 0
        %915 = vmatprep.subr.bf16.mxu0 0
        %916 = vmatpush1.bf16.msra.mxu0 0
        %917 = vmatprep.subr.bf16.mxu0 0
        %918 = vmatpush1.bf16.msra.mxu0 0
        %919 = vmatprep.subr.bf16.mxu0 0
        %920 = vmatpush1.bf16.msra.mxu0 0
        %921 = vmatprep.subr.bf16.mxu0 0
        %922 = vmatpush1.bf16.msra.mxu0 0
        %923 = vmatprep.subr.bf16.mxu0 0
        %924 = vmatpush1.bf16.msra.mxu0 0
        %925 = vmatprep.subr.bf16.mxu0 0
        %926 = vmatpush1.bf16.msra.mxu0 0
        %927 = vmatprep.mubr.bf16.mxu0 0
        %928 = vmatmul.mubr.bf16.gmra.mrb[0].mxu0 %v800
        %v929 = vpop.f32.mrb[0].mxu0
        %v930 = vadd.f32 0.0, %v929
        %v931 = vpop.f32.mrb[0].mxu0
        %v932 = vpop.f32.mrb[0].mxu0
        %v933 = vadd.f32 0.0, %v932
        %v934 = vpop.f32.mrb[0].mxu0
        %935 = vmatprep.mubr.bf16.mxu0 0
        %936 = vmatmul.mubr.bf16.gmra.mrb[0].mxu0 %v803
        %v937 = vpop.f32.mrb[0].mxu0
        %v938 = vadd.f32 0.0, %v937
        %v939 = vpop.f32.mrb[0].mxu0
        %v940 = vpop.f32.mrb[0].mxu0
        %v941 = vadd.f32 0.0, %v940
        %v942 = vpop.f32.mrb[0].mxu0
        %943 = vmatprep.mubr.bf16.mxu0 0
        %944 = vmatmul.mubr.bf16.gmra.mrb[0].mxu0 %v806
        %v945 = vpop.f32.mrb[0].mxu0
        %v946 = vadd.f32 0.0, %v945
        %v947 = vpop.f32.mrb[0].mxu0
        %v948 = vpop.f32.mrb[0].mxu0
        %v949 = vadd.f32 0.0, %v948
        %v950 = vpop.f32.mrb[0].mxu0
        %951 = vmatprep.mubr.bf16.mxu0 0
        %952 = vmatmul.mubr.bf16.gmra.mrb[0].mxu0 %v809
        %v953 = vpop.f32.mrb[0].mxu0
        %v954 = vadd.f32 0.0, %v953
        %v955 = vpop.f32.mrb[0].mxu0
        %v956 = vpop.f32.mrb[0].mxu0
        %v957 = vadd.f32 0.0, %v956
        %v958 = vpop.f32.mrb[0].mxu0
        %959 = vmatprep.mubr.bf16.mxu0 0
        %960 = vmatmul.mubr.bf16.gmra.mrb[0].mxu0 %v812
        %v961 = vpop.f32.mrb[0].mxu0
        %v962 = vadd.f32 0.0, %v961
        %v963 = vpop.f32.mrb[0].mxu0
        %v964 = vpop.f32.mrb[0].mxu0
        %v965 = vadd.f32 0.0, %v964
        %v966 = vpop.f32.mrb[0].mxu0
        %967 = vmatprep.mubr.bf16.mxu0 0
        %968 = vmatmul.mubr.bf16.gmra.mrb[0].mxu0 %v815
        %v969 = vpop.f32.mrb[0].mxu0
        %v970 = vadd.f32 0.0, %v969
        %v971 = vpop.f32.mrb[0].mxu0
        %v972 = vpop.f32.mrb[0].mxu0
        %v973 = vadd.f32 0.0, %v972
        %v974 = vpop.f32.mrb[0].mxu0
        %975 = vmatprep.mubr.bf16.mxu0 0
        %976 = vmatmul.mubr.bf16.gmra.mrb[0].mxu0 %v818
        %v977 = vpop.f32.mrb[0].mxu0
        %v978 = vadd.f32 0.0, %v977
        %v979 = vpop.f32.mrb[0].mxu0
        %v980 = vpop.f32.mrb[0].mxu0
        %v981 = vadd.f32 0.0, %v980
        %v982 = vpop.f32.mrb[0].mxu0
        %983 = vmatprep.mubr.bf16.mxu0 0
        %984 = vmatmul.mubr.bf16.gmra.mrb[0].mxu0 %v821
        %v985 = vpop.f32.mrb[0].mxu0
        %v986 = vadd.f32 0.0, %v985
        %v987 = vpop.f32.mrb[0].mxu0
        %v988 = vpop.f32.mrb[0].mxu0
        %v989 = vadd.f32 0.0, %v988
        %v990 = vpop.f32.mrb[0].mxu0
        %991 = vmatprep.mubr.bf16.mxu0 0
        %992 = vmatmul.mubr.bf16.gmra.mrb[0].mxu0 %v824
        %v993 = vpop.f32.mrb[0].mxu0
        %v994 = vadd.f32 0.0, %v993
        %v995 = vpop.f32.mrb[0].mxu0
        %v996 = vpop.f32.mrb[0].mxu0
        %v997 = vadd.f32 0.0, %v996
        %v998 = vpop.f32.mrb[0].mxu0
        %999 = vmatprep.mubr.bf16.mxu0 0
        %1000 = vmatmul.mubr.bf16.gmra.mrb[0].mxu0 %v827
        %v1001 = vpop.f32.mrb[0].mxu0
        %v1002 = vadd.f32 0.0, %v1001
        %v1003 = vpop.f32.mrb[0].mxu0
        %v1004 = vpop.f32.mrb[0].mxu0
        %v1005 = vadd.f32 0.0, %v1004
        %v1006 = vpop.f32.mrb[0].mxu0
        %1007 = vmatprep.mubr.bf16.mxu0 0
        %1008 = vmatmul.mubr.bf16.gmra.mrb[0].mxu0 %v830
        %v1009 = vpop.f32.mrb[0].mxu0
        %v1010 = vadd.f32 0.0, %v1009
        %v1011 = vpop.f32.mrb[0].mxu0
        %v1012 = vpop.f32.mrb[0].mxu0
        %v1013 = vadd.f32 0.0, %v1012
        %v1014 = vpop.f32.mrb[0].mxu0
        %1015 = vmatprep.mubr.bf16.mxu0 0
        %1016 = vmatmul.mubr.bf16.gmra.mrb[0].mxu0 %v833
        %v1017 = vpop.f32.mrb[0].mxu0
        %v1018 = vadd.f32 0.0, %v1017
        %v1019 = vpop.f32.mrb[0].mxu0
        %v1020 = vpop.f32.mrb[0].mxu0
        %v1021 = vadd.f32 0.0, %v1020
        %v1022 = vpop.f32.mrb[0].mxu0
        %1023 = vmatprep.mubr.bf16.mxu0 0
        %1024 = vmatmul.mubr.bf16.gmra.mrb[0].mxu0 %v836
        %v1025 = vpop.f32.mrb[0].mxu0
        %v1026 = vadd.f32 0.0, %v1025
        %v1027 = vpop.f32.mrb[0].mxu0
        %v1028 = vpop.f32.mrb[0].mxu0
        %v1029 = vadd.f32 0.0, %v1028
        %v1030 = vpop.f32.mrb[0].mxu0
        %1031 = vmatprep.mubr.bf16.mxu0 0
        %1032 = vmatmul.mubr.bf16.gmra.mrb[0].mxu0 %v839
        %v1033 = vpop.f32.mrb[0].mxu0
        %v1034 = vadd.f32 0.0, %v1033
        %v1035 = vpop.f32.mrb[0].mxu0
        %v1036 = vpop.f32.mrb[0].mxu0
        %v1037 = vadd.f32 0.0, %v1036
        %v1038 = vpop.f32.mrb[0].mxu0
        %1039 = vmatprep.mubr.bf16.mxu0 0
        %1040 = vmatmul.mubr.bf16.gmra.mrb[0].mxu0 %v842
        %v1041 = vpop.f32.mrb[0].mxu0
        %v1042 = vadd.f32 0.0, %v1041
        %v1043 = vpop.f32.mrb[0].mxu0
        %v1044 = vpop.f32.mrb[0].mxu0
        %v1045 = vadd.f32 0.0, %v1044
        %v1046 = vpop.f32.mrb[0].mxu0
        %1047 = vmatprep.mubr.bf16.mxu0 0
        %1048 = vmatmul.mubr.bf16.gmra.mrb[0].mxu0 %v845
        %v1049 = vpop.f32.mrb[0].mxu0
        %v1050 = vadd.f32 0.0, %v1049
        %v1051 = vpop.f32.mrb[0].mxu0
        %v1052 = vpop.f32.mrb[0].mxu0
        %v1053 = vadd.f32 0.0, %v1052
        %v1054 = vpop.f32.mrb[0].mxu0
        %1055 = vmatprep.mubr.bf16.mxu0 0
        %1056 = vmatmul.mubr.bf16.gmra.mrb[0].mxu0 %v848
        %v1057 = vpop.f32.mrb[0].mxu0
        %v1058 = vadd.f32 0.0, %v1057
        %v1059 = vpop.f32.mrb[0].mxu0
        %v1060 = vpop.f32.mrb[0].mxu0
        %v1061 = vadd.f32 0.0, %v1060
        %v1062 = vpop.f32.mrb[0].mxu0
        %1063 = vmatprep.mubr.bf16.mxu0 0
        %1064 = vmatmul.mubr.bf16.gmra.mrb[0].mxu0 %v851
        %v1065 = vpop.f32.mrb[0].mxu0
        %v1066 = vadd.f32 0.0, %v1065
        %v1067 = vpop.f32.mrb[0].mxu0
        %v1068 = vpop.f32.mrb[0].mxu0
        %v1069 = vadd.f32 0.0, %v1068
        %v1070 = vpop.f32.mrb[0].mxu0
        %1071 = vmatprep.mubr.bf16.mxu0 0
        %1072 = vmatmul.mubr.bf16.gmra.mrb[0].mxu0 %v854
        %v1073 = vpop.f32.mrb[0].mxu0
        %v1074 = vadd.f32 0.0, %v1073
        %v1075 = vpop.f32.mrb[0].mxu0
        %v1076 = vpop.f32.mrb[0].mxu0
        %v1077 = vadd.f32 0.0, %v1076
        %v1078 = vpop.f32.mrb[0].mxu0
        %1079 = vmatprep.mubr.bf16.mxu0 0
        %1080 = vmatmul.mubr.bf16.gmra.mrb[0].mxu0 %v857
        %v1081 = vpop.f32.mrb[0].mxu0
        %v1082 = vadd.f32 0.0, %v1081
        %v1083 = vpop.f32.mrb[0].mxu0
        %v1084 = vpop.f32.mrb[0].mxu0
        %v1085 = vadd.f32 0.0, %v1084
        %v1086 = vpop.f32.mrb[0].mxu0
        %1087 = vmatprep.mubr.bf16.mxu0 0
        %1088 = vmatmul.mubr.bf16.gmra.mrb[0].mxu0 %v860
        %v1089 = vpop.f32.mrb[0].mxu0
        %v1090 = vadd.f32 0.0, %v1089
        %v1091 = vpop.f32.mrb[0].mxu0
        %v1092 = vpop.f32.mrb[0].mxu0
        %v1093 = vadd.f32 0.0, %v1092
        %v1094 = vpop.f32.mrb[0].mxu0
        %1095 = vmatprep.mubr.bf16.mxu0 0
        %1096 = vmatmul.mubr.bf16.gmra.mrb[0].mxu0 %v863
        %v1097 = vpop.f32.mrb[0].mxu0
        %v1098 = vadd.f32 0.0, %v1097
        %v1099 = vpop.f32.mrb[0].mxu0
        %v1100 = vpop.f32.mrb[0].mxu0
        %v1101 = vadd.f32 0.0, %v1100
        %v1102 = vpop.f32.mrb[0].mxu0
        %1103 = vmatprep.mubr.bf16.mxu0 0
        %1104 = vmatmul.mubr.bf16.gmra.mrb[0].mxu0 %v866
        %v1105 = vpop.f32.mrb[0].mxu0
        %v1106 = vadd.f32 0.0, %v1105
        %v1107 = vpop.f32.mrb[0].mxu0
        %v1108 = vpop.f32.mrb[0].mxu0
        %v1109 = vadd.f32 0.0, %v1108
        %v1110 = vpop.f32.mrb[0].mxu0
        %1111 = vmatprep.mubr.bf16.mxu0 0
        %1112 = vmatmul.mubr.bf16.gmra.mrb[0].mxu0 %v869
        %v1113 = vpop.f32.mrb[0].mxu0
        %v1114 = vadd.f32 0.0, %v1113
        %v1115 = vpop.f32.mrb[0].mxu0
        %v1116 = vpop.f32.mrb[0].mxu0
        %v1117 = vadd.f32 0.0, %v1116
        %v1118 = vpop.f32.mrb[0].mxu0
        %1119 = vmatprep.mubr.bf16.mxu0 0
        %1120 = vmatmul.mubr.bf16.gmra.mrb[0].mxu0 %v872
        %v1121 = vpop.f32.mrb[0].mxu0
        %v1122 = vadd.f32 0.0, %v1121
        %v1123 = vpop.f32.mrb[0].mxu0
        %v1124 = vpop.f32.mrb[0].mxu0
        %v1125 = vadd.f32 0.0, %v1124
        %v1126 = vpop.f32.mrb[0].mxu0
        %1127 = vmatprep.mubr.bf16.mxu0 0
        %1128 = vmatmul.mubr.bf16.gmra.mrb[0].mxu0 %v875
        %v1129 = vpop.f32.mrb[0].mxu0
        %v1130 = vadd.f32 0.0, %v1129
        %v1131 = vpop.f32.mrb[0].mxu0
        %v1132 = vpop.f32.mrb[0].mxu0
        %v1133 = vadd.f32 0.0, %v1132
        %v1134 = vpop.f32.mrb[0].mxu0
        %1135 = vmatprep.mubr.bf16.mxu0 0
        %1136 = vmatmul.mubr.bf16.gmra.mrb[0].mxu0 %v878
        %v1137 = vpop.f32.mrb[0].mxu0
        %v1138 = vadd.f32 0.0, %v1137
        %v1139 = vpop.f32.mrb[0].mxu0
        %v1140 = vpop.f32.mrb[0].mxu0
        %v1141 = vadd.f32 0.0, %v1140
        %v1142 = vpop.f32.mrb[0].mxu0
        %1143 = vmatprep.mubr.bf16.mxu0 0
        %1144 = vmatmul.mubr.bf16.gmra.mrb[0].mxu0 %v881
        %v1145 = vpop.f32.mrb[0].mxu0
        %v1146 = vadd.f32 0.0, %v1145
        %v1147 = vpop.f32.mrb[0].mxu0
        %v1148 = vpop.f32.mrb[0].mxu0
        %v1149 = vadd.f32 0.0, %v1148
        %v1150 = vpop.f32.mrb[0].mxu0
        %1151 = vmatprep.mubr.bf16.mxu0 0
        %1152 = vmatmul.mubr.bf16.gmra.mrb[0].mxu0 %v884
        %v1153 = vpop.f32.mrb[0].mxu0
        %v1154 = vadd.f32 0.0, %v1153
        %v1155 = vpop.f32.mrb[0].mxu0
        %v1156 = vpop.f32.mrb[0].mxu0
        %v1157 = vadd.f32 0.0, %v1156
        %v1158 = vpop.f32.mrb[0].mxu0
        %1159 = vmatprep.mubr.bf16.mxu0 0
        %1160 = vmatmul.mubr.bf16.gmra.mrb[0].mxu0 %v887
        %v1161 = vpop.f32.mrb[0].mxu0
        %v1162 = vadd.f32 0.0, %v1161
        %v1163 = vpop.f32.mrb[0].mxu0
        %v1164 = vpop.f32.mrb[0].mxu0
        %v1165 = vadd.f32 0.0, %v1164
        %v1166 = vpop.f32.mrb[0].mxu0
        %1167 = vmatprep.mubr.bf16.mxu0 0
        %1168 = vmatmul.mubr.bf16.gmra.mrb[0].mxu0 %v890
        %v1169 = vpop.f32.mrb[0].mxu0
        %v1170 = vadd.f32 0.0, %v1169
        %v1171 = vpop.f32.mrb[0].mxu0
        %v1172 = vpop.f32.mrb[0].mxu0
        %v1173 = vadd.f32 0.0, %v1172
        %v1174 = vpop.f32.mrb[0].mxu0
        %1175 = vmatprep.mubr.bf16.mxu0 0
        %1176 = vmatmul.mubr.bf16.gmra.mrb[0].mxu0 %v893
        %v1177 = vpop.f32.mrb[0].mxu0
        %v1178 = vadd.f32 0.0, %v1177
        %v1179 = vpop.f32.mrb[0].mxu0
        %v1180 = vpop.f32.mrb[0].mxu0
        %v1181 = vpop.f32.mrb[0].mxu0
        %1182 = vdwg.mxu0
        %v1183 = vmul.f32 %v173, 1.442695
        %v1184 = vpow.pop %v1183
        %v1185 = vmul.f32 %v174, 1.442695
        %v1186 = vpow.pop %v1185
        %v1187 = vmul.f32 %v175, 1.442695
        %v1188 = vpow.pop %v1187
        %v1189 = vmul.f32 %v176, 1.442695
        %v1190 = vpow.pop %v1189
        %v1191 = vmul.f32 %v177, 1.442695
        %v1192 = vpow.pop %v1191
        %v1193 = vmul.f32 %v178, 1.442695
        %v1194 = vpow.pop %v1193
        %v1195 = vmul.f32 %v179, 1.442695
        %v1196 = vpow.pop %v1195
        %v1197 = vmul.f32 %v180, 1.442695
        %v1198 = vpow.pop %v1197
        %v1199 = vmul.f32 %v181, 1.442695
        %v1200 = vpow.pop %v1199
        %v1201 = vmul.f32 %v182, 1.442695
        %v1202 = vpow.pop %v1201
        %v1203 = vmul.f32 %v183, 1.442695
        %v1204 = vpow.pop %v1203
        %v1205 = vmul.f32 %v184, 1.442695
        %v1206 = vpow.pop %v1205
        %v1207 = vmul.f32 %v185, 1.442695
        %v1208 = vpow.pop %v1207
        %v1209 = vmul.f32 %v186, 1.442695
        %v1210 = vpow.pop %v1209
        %v1211 = vmul.f32 %v187, 1.442695
        %v1212 = vpow.pop %v1211
        %v1213 = vmul.f32 %v188, 1.442695
        %v1214 = vpow.pop %v1213
        %v1215 = vmul.f32 %v189, 1.442695
        %v1216 = vpow.pop %v1215
        %v1217 = vmul.f32 %v190, 1.442695
        %v1218 = vpow.pop %v1217
        %v1219 = vmul.f32 %v191, 1.442695
        %v1220 = vpow.pop %v1219
        %v1221 = vmul.f32 %v192, 1.442695
        %v1222 = vpow.pop %v1221
        %v1223 = vmul.f32 %v193, 1.442695
        %v1224 = vpow.pop %v1223
        %v1225 = vmul.f32 %v194, 1.442695
        %v1226 = vpow.pop %v1225
        %v1227 = vmul.f32 %v195, 1.442695
        %v1228 = vpow.pop %v1227
        %v1229 = vmul.f32 %v196, 1.442695
        %v1230 = vpow.pop %v1229
        %v1231 = vmul.f32 %v197, 1.442695
        %v1232 = vpow.pop %v1231
        %v1233 = vmul.f32 %v198, 1.442695
        %v1234 = vpow.pop %v1233
        %v1235 = vmul.f32 %v199, 1.442695
        %v1236 = vpow.pop %v1235
        %v1237 = vmul.f32 %v200, 1.442695
        %v1238 = vpow.pop %v1237
        %v1239 = vmul.f32 %v201, 1.442695
        %v1240 = vpow.pop %v1239
        %v1241 = vmul.f32 %v202, 1.442695
        %v1242 = vpow.pop %v1241
        %v1243 = vmul.f32 %v203, 1.442695
        %v1244 = vpow.pop %v1243
        %v1245 = vmul.f32 %v204, 1.442695
        %v1246 = vpow.pop %v1245
        %v1247 = vmul.f32 %v205, 1.442695
        %v1248 = vpow.pop %v1247
        %v1249 = vmul.f32 %v206, 1.442695
        %v1250 = vpow.pop %v1249
        %v1251 = vmul.f32 %v207, 1.442695
        %v1252 = vpow.pop %v1251
        %v1253 = vmul.f32 %v208, 1.442695
        %v1254 = vpow.pop %v1253
        %v1255 = vmul.f32 %v209, 1.442695
        %v1256 = vpow.pop %v1255
        %v1257 = vmul.f32 %v210, 1.442695
        %v1258 = vpow.pop %v1257
        %v1259 = vmul.f32 %v211, 1.442695
        %v1260 = vpow.pop %v1259
        %v1261 = vmul.f32 %v212, 1.442695
        %v1262 = vpow.pop %v1261
        %v1263 = vmul.f32 %v213, 1.442695
        %v1264 = vpow.pop %v1263
        %v1265 = vmul.f32 %v214, 1.442695
        %v1266 = vpow.pop %v1265
        %v1267 = vmul.f32 %v215, 1.442695
        %v1268 = vpow.pop %v1267
        %v1269 = vmul.f32 %v216, 1.442695
        %v1270 = vpow.pop %v1269
        %v1271 = vmul.f32 %v217, 1.442695
        %v1272 = vpow.pop %v1271
        %v1273 = vmul.f32 %v218, 1.442695
        %v1274 = vpow.pop %v1273
        %v1275 = vmul.f32 %v219, 1.442695
        %v1276 = vpow.pop %v1275
        %v1277 = vmul.f32 %v220, 1.442695
        %v1278 = vpow.pop %v1277
        %v1279 = vmul.f32 %v221, 1.442695
        %v1280 = vpow.pop %v1279
        %v1281 = vmul.f32 %v222, 1.442695
        %v1282 = vpow.pop %v1281
        %v1283 = vmul.f32 %v223, 1.442695
        %v1284 = vpow.pop %v1283
        %v1285 = vmul.f32 %v224, 1.442695
        %v1286 = vpow.pop %v1285
        %v1287 = vmul.f32 %v225, 1.442695
        %v1288 = vpow.pop %v1287
        %v1289 = vmul.f32 %v226, 1.442695
        %v1290 = vpow.pop %v1289
        %v1291 = vmul.f32 %v227, 1.442695
        %v1292 = vpow.pop %v1291
        %v1293 = vmul.f32 %v228, 1.442695
        %v1294 = vpow.pop %v1293
        %v1295 = vmul.f32 %v229, 1.442695
        %v1296 = vpow.pop %v1295
        %v1297 = vmul.f32 %v230, 1.442695
        %v1298 = vpow.pop %v1297
        %v1299 = vmul.f32 %v231, 1.442695
        %v1300 = vpow.pop %v1299
        %v1301 = vmul.f32 %v232, 1.442695
        %v1302 = vpow.pop %v1301
        %v1303 = vmul.f32 %v233, 1.442695
        %v1304 = vpow.pop %v1303
        %v1305 = vmul.f32 %v234, 1.442695
        %v1306 = vpow.pop %v1305
        %v1307 = vmul.f32 %v235, 1.442695
        %v1308 = vpow.pop %v1307
        %1310 = vset.pattern.permute.xlu0 16
        %1311 = vperm.xlu0 %1310, %v1184
        %v1312 = vpop.permute.xlu0 %1311
        %1315 = vset.pattern.permute.xlu0 16
        %1316 = vperm.xlu0 %1315, %v1186
        %v1317 = vpop.permute.xlu0 %1316
        %1320 = vset.pattern.permute.xlu0 16
        %1321 = vperm.xlu0 %1320, %v1188
        %v1322 = vpop.permute.xlu0 %1321
        %1325 = vset.pattern.permute.xlu0 16
        %1326 = vperm.xlu0 %1325, %v1190
        %v1327 = vpop.permute.xlu0 %1326
        %1330 = vset.pattern.permute.xlu0 16
        %1331 = vperm.xlu0 %1330, %v1192
        %v1332 = vpop.permute.xlu0 %1331
        %1335 = vset.pattern.permute.xlu0 16
        %1336 = vperm.xlu0 %1335, %v1194
        %v1337 = vpop.permute.xlu0 %1336
        %1340 = vset.pattern.permute.xlu0 16
        %1341 = vperm.xlu0 %1340, %v1196
        %v1342 = vpop.permute.xlu0 %1341
        %1345 = vset.pattern.permute.xlu0 16
        %1346 = vperm.xlu0 %1345, %v1198
        %v1347 = vpop.permute.xlu0 %1346
        %1350 = vset.pattern.permute.xlu0 16
        %1351 = vperm.xlu0 %1350, %v1200
        %v1352 = vpop.permute.xlu0 %1351
        %1355 = vset.pattern.permute.xlu0 16
        %1356 = vperm.xlu0 %1355, %v1202
        %v1357 = vpop.permute.xlu0 %1356
        %1360 = vset.pattern.permute.xlu0 16
        %1361 = vperm.xlu0 %1360, %v1204
        %v1362 = vpop.permute.xlu0 %1361
        %1365 = vset.pattern.permute.xlu0 16
        %1366 = vperm.xlu0 %1365, %v1206
        %v1367 = vpop.permute.xlu0 %1366
        %1370 = vset.pattern.permute.xlu0 16
        %1371 = vperm.xlu0 %1370, %v1208
        %v1372 = vpop.permute.xlu0 %1371
        %1375 = vset.pattern.permute.xlu0 16
        %1376 = vperm.xlu0 %1375, %v1210
        %v1377 = vpop.permute.xlu0 %1376
        %1380 = vset.pattern.permute.xlu0 16
        %1381 = vperm.xlu0 %1380, %v1212
        %v1382 = vpop.permute.xlu0 %1381
        %1385 = vset.pattern.permute.xlu0 16
        %1386 = vperm.xlu0 %1385, %v1214
        %v1387 = vpop.permute.xlu0 %1386
        %1390 = vset.pattern.permute.xlu0 16
        %1391 = vperm.xlu0 %1390, %v1216
        %v1392 = vpop.permute.xlu0 %1391
        %1395 = vset.pattern.permute.xlu0 16
        %1396 = vperm.xlu0 %1395, %v1218
        %v1397 = vpop.permute.xlu0 %1396
        %1400 = vset.pattern.permute.xlu0 16
        %1401 = vperm.xlu0 %1400, %v1220
        %v1402 = vpop.permute.xlu0 %1401
        %1405 = vset.pattern.permute.xlu0 16
        %1406 = vperm.xlu0 %1405, %v1222
        %v1407 = vpop.permute.xlu0 %1406
        %1410 = vset.pattern.permute.xlu0 16
        %1411 = vperm.xlu0 %1410, %v1224
        %v1412 = vpop.permute.xlu0 %1411
        %1415 = vset.pattern.permute.xlu0 16
        %1416 = vperm.xlu0 %1415, %v1226
        %v1417 = vpop.permute.xlu0 %1416
        %1420 = vset.pattern.permute.xlu0 16
        %1421 = vperm.xlu0 %1420, %v1228
        %v1422 = vpop.permute.xlu0 %1421
        %1425 = vset.pattern.permute.xlu0 16
        %1426 = vperm.xlu0 %1425, %v1230
        %v1427 = vpop.permute.xlu0 %1426
        %1430 = vset.pattern.permute.xlu0 16
        %1431 = vperm.xlu0 %1430, %v1232
        %v1432 = vpop.permute.xlu0 %1431
        %1435 = vset.pattern.permute.xlu0 16
        %1436 = vperm.xlu0 %1435, %v1234
        %v1437 = vpop.permute.xlu0 %1436
        %1440 = vset.pattern.permute.xlu0 16
        %1441 = vperm.xlu0 %1440, %v1236
        %v1442 = vpop.permute.xlu0 %1441
        %1445 = vset.pattern.permute.xlu0 16
        %1446 = vperm.xlu0 %1445, %v1238
        %v1447 = vpop.permute.xlu0 %1446
        %1450 = vset.pattern.permute.xlu0 16
        %1451 = vperm.xlu0 %1450, %v1240
        %v1452 = vpop.permute.xlu0 %1451
        %1455 = vset.pattern.permute.xlu0 16
        %1456 = vperm.xlu0 %1455, %v1242
        %v1457 = vpop.permute.xlu0 %1456
        %1460 = vset.pattern.permute.xlu0 16
        %1461 = vperm.xlu0 %1460, %v1244
        %v1462 = vpop.permute.xlu0 %1461
        %1465 = vset.pattern.permute.xlu0 16
        %1466 = vperm.xlu0 %1465, %v1246
        %v1467 = vpop.permute.xlu0 %1466
        %1470 = vset.pattern.permute.xlu0 16
        %1471 = vperm.xlu0 %1470, %v1248
        %v1472 = vpop.permute.xlu0 %1471
        %1475 = vset.pattern.permute.xlu0 16
        %1476 = vperm.xlu0 %1475, %v1250
        %v1477 = vpop.permute.xlu0 %1476
        %1480 = vset.pattern.permute.xlu0 16
        %1481 = vperm.xlu0 %1480, %v1252
        %v1482 = vpop.permute.xlu0 %1481
        %1485 = vset.pattern.permute.xlu0 16
        %1486 = vperm.xlu0 %1485, %v1254
        %v1487 = vpop.permute.xlu0 %1486
        %1490 = vset.pattern.permute.xlu0 16
        %1491 = vperm.xlu0 %1490, %v1256
        %v1492 = vpop.permute.xlu0 %1491
        %1495 = vset.pattern.permute.xlu0 16
        %1496 = vperm.xlu0 %1495, %v1258
        %v1497 = vpop.permute.xlu0 %1496
        %1500 = vset.pattern.permute.xlu0 16
        %1501 = vperm.xlu0 %1500, %v1260
        %v1502 = vpop.permute.xlu0 %1501
        %1505 = vset.pattern.permute.xlu0 16
        %1506 = vperm.xlu0 %1505, %v1262
        %v1507 = vpop.permute.xlu0 %1506
        %1510 = vset.pattern.permute.xlu0 16
        %1511 = vperm.xlu0 %1510, %v1264
        %v1512 = vpop.permute.xlu0 %1511
        %1515 = vset.pattern.permute.xlu0 16
        %1516 = vperm.xlu0 %1515, %v1266
        %v1517 = vpop.permute.xlu0 %1516
        %1520 = vset.pattern.permute.xlu0 16
        %1521 = vperm.xlu0 %1520, %v1268
        %v1522 = vpop.permute.xlu0 %1521
        %1525 = vset.pattern.permute.xlu0 16
        %1526 = vperm.xlu0 %1525, %v1270
        %v1527 = vpop.permute.xlu0 %1526
        %1530 = vset.pattern.permute.xlu0 16
        %1531 = vperm.xlu0 %1530, %v1272
        %v1532 = vpop.permute.xlu0 %1531
        %1535 = vset.pattern.permute.xlu0 16
        %1536 = vperm.xlu0 %1535, %v1274
        %v1537 = vpop.permute.xlu0 %1536
        %1540 = vset.pattern.permute.xlu0 16
        %1541 = vperm.xlu0 %1540, %v1276
        %v1542 = vpop.permute.xlu0 %1541
        %1545 = vset.pattern.permute.xlu0 16
        %1546 = vperm.xlu0 %1545, %v1278
        %v1547 = vpop.permute.xlu0 %1546
        %1550 = vset.pattern.permute.xlu0 16
        %1551 = vperm.xlu0 %1550, %v1280
        %v1552 = vpop.permute.xlu0 %1551
        %1555 = vset.pattern.permute.xlu0 16
        %1556 = vperm.xlu0 %1555, %v1282
        %v1557 = vpop.permute.xlu0 %1556
        %1560 = vset.pattern.permute.xlu0 16
        %1561 = vperm.xlu0 %1560, %v1284
        %v1562 = vpop.permute.xlu0 %1561
        %1565 = vset.pattern.permute.xlu0 16
        %1566 = vperm.xlu0 %1565, %v1286
        %v1567 = vpop.permute.xlu0 %1566
        %1570 = vset.pattern.permute.xlu0 16
        %1571 = vperm.xlu0 %1570, %v1288
        %v1572 = vpop.permute.xlu0 %1571
        %1575 = vset.pattern.permute.xlu0 16
        %1576 = vperm.xlu0 %1575, %v1290
        %v1577 = vpop.permute.xlu0 %1576
        %1580 = vset.pattern.permute.xlu0 16
        %1581 = vperm.xlu0 %1580, %v1292
        %v1582 = vpop.permute.xlu0 %1581
        %1585 = vset.pattern.permute.xlu0 16
        %1586 = vperm.xlu0 %1585, %v1294
        %v1587 = vpop.permute.xlu0 %1586
        %1590 = vset.pattern.permute.xlu0 16
        %1591 = vperm.xlu0 %1590, %v1296
        %v1592 = vpop.permute.xlu0 %1591
        %1595 = vset.pattern.permute.xlu0 16
        %1596 = vperm.xlu0 %1595, %v1298
        %v1597 = vpop.permute.xlu0 %1596
        %1600 = vset.pattern.permute.xlu0 16
        %1601 = vperm.xlu0 %1600, %v1300
        %v1602 = vpop.permute.xlu0 %1601
        %1605 = vset.pattern.permute.xlu0 16
        %1606 = vperm.xlu0 %1605, %v1302
        %v1607 = vpop.permute.xlu0 %1606
        %1610 = vset.pattern.permute.xlu0 16
        %1611 = vperm.xlu0 %1610, %v1304
        %v1612 = vpop.permute.xlu0 %1611
        %1615 = vset.pattern.permute.xlu0 16
        %1616 = vperm.xlu0 %1615, %v1306
        %v1617 = vpop.permute.xlu0 %1616
        %1620 = vset.pattern.permute.xlu0 16
        %1621 = vperm.xlu0 %1620, %v1308
        %v1622 = vpop.permute.xlu0 %1621
        %v1624 = vmul.f32 %v930, %v1312
        %v1625 = vmul.f32 %v933, %v1317
        %v1626 = vmul.f32 %v938, %v1322
        %v1627 = vmul.f32 %v941, %v1327
        %v1628 = vmul.f32 %v946, %v1332
        %v1629 = vmul.f32 %v949, %v1337
        %v1630 = vmul.f32 %v954, %v1342
        %v1631 = vmul.f32 %v957, %v1347
        %v1632 = vmul.f32 %v962, %v1352
        %v1633 = vmul.f32 %v965, %v1357
        %v1634 = vmul.f32 %v970, %v1362
        %v1635 = vmul.f32 %v973, %v1367
        %v1636 = vmul.f32 %v978, %v1372
        %v1637 = vmul.f32 %v981, %v1377
        %v1638 = vmul.f32 %v986, %v1382
        %v1639 = vmul.f32 %v989, %v1387
        %v1640 = vmul.f32 %v994, %v1392
        %v1641 = vmul.f32 %v997, %v1397
        %v1642 = vmul.f32 %v1002, %v1402
        %v1643 = vmul.f32 %v1005, %v1407
        %v1644 = vmul.f32 %v1010, %v1412
        %v1645 = vmul.f32 %v1013, %v1417
        %v1646 = vmul.f32 %v1018, %v1422
        %v1647 = vmul.f32 %v1021, %v1427
        %v1648 = vmul.f32 %v1026, %v1432
        %v1649 = vmul.f32 %v1029, %v1437
        %v1650 = vmul.f32 %v1034, %v1442
        %v1651 = vmul.f32 %v1037, %v1447
        %v1652 = vmul.f32 %v1042, %v1452
        %v1653 = vmul.f32 %v1045, %v1457
        %v1654 = vmul.f32 %v1050, %v1462
        %v1655 = vmul.f32 %v1053, %v1467
        %v1656 = vmul.f32 %v1058, %v1472
        %v1657 = vmul.f32 %v1061, %v1477
        %v1658 = vmul.f32 %v1066, %v1482
        %v1659 = vmul.f32 %v1069, %v1487
        %v1660 = vmul.f32 %v1074, %v1492
        %v1661 = vmul.f32 %v1077, %v1497
        %v1662 = vmul.f32 %v1082, %v1502
        %v1663 = vmul.f32 %v1085, %v1507
        %v1664 = vmul.f32 %v1090, %v1512
        %v1665 = vmul.f32 %v1093, %v1517
        %v1666 = vmul.f32 %v1098, %v1522
        %v1667 = vmul.f32 %v1101, %v1527
        %v1668 = vmul.f32 %v1106, %v1532
        %v1669 = vmul.f32 %v1109, %v1537
        %v1670 = vmul.f32 %v1114, %v1542
        %v1671 = vmul.f32 %v1117, %v1547
        %v1672 = vmul.f32 %v1122, %v1552
        %v1673 = vmul.f32 %v1125, %v1557
        %v1674 = vmul.f32 %v1130, %v1562
        %v1675 = vmul.f32 %v1133, %v1567
        %v1676 = vmul.f32 %v1138, %v1572
        %v1677 = vmul.f32 %v1141, %v1577
        %v1678 = vmul.f32 %v1146, %v1582
        %v1679 = vmul.f32 %v1149, %v1587
        %v1680 = vmul.f32 %v1154, %v1592
        %v1681 = vmul.f32 %v1157, %v1597
        %v1682 = vmul.f32 %v1162, %v1602
        %v1683 = vmul.f32 %v1165, %v1607
        %v1684 = vmul.f32 %v1170, %v1612
        %v1685 = vmul.f32 %v1173, %v1617
        %v1686 = vmul.f32 %v1178, %v1622
        %1687 = vst [vmem:[%s164] sm:$0xff] %v1624
        %1688 = vst [vmem:[%s164 + $0x8] sm:$0xff] %v1625
        %1689 = vst [vmem:[%s164 + $0x10] sm:$0xff] %v1626
        %1690 = vst [vmem:[%s164 + $0x18] sm:$0xff] %v1627
        %1691 = vst [vmem:[%s164 + $0x20] sm:$0xff] %v1628
        %1692 = vst [vmem:[%s164 + $0x28] sm:$0xff] %v1629
        %1693 = vst [vmem:[%s164 + $0x30] sm:$0xff] %v1630
        %1694 = vst [vmem:[%s164 + $0x38] sm:$0xff] %v1631
        %1695 = vst [vmem:[%s164 + $0x40] sm:$0xff] %v1632
        %1696 = vst [vmem:[%s164 + $0x48] sm:$0xff] %v1633
        %1697 = vst [vmem:[%s164 + $0x50] sm:$0xff] %v1634
        %1698 = vst [vmem:[%s164 + $0x58] sm:$0xff] %v1635
        %1699 = vst [vmem:[%s164 + $0x60] sm:$0xff] %v1636
        %1700 = vst [vmem:[%s164 + $0x68] sm:$0xff] %v1637
        %1701 = vst [vmem:[%s164 + $0x70] sm:$0xff] %v1638
        %1702 = vst [vmem:[%s164 + $0x78] sm:$0xff] %v1639
        %1703 = vst [vmem:[%s164 + $0x80] sm:$0xff] %v1640
        %1704 = vst [vmem:[%s164 + $0x88] sm:$0xff] %v1641
        %1705 = vst [vmem:[%s164 + $0x90] sm:$0xff] %v1642
        %1706 = vst [vmem:[%s164 + $0x98] sm:$0xff] %v1643
        %1707 = vst [vmem:[%s164 + $0xa0] sm:$0xff] %v1644
        %1708 = vst [vmem:[%s164 + $0xa8] sm:$0xff] %v1645
        %1709 = vst [vmem:[%s164 + $0xb0] sm:$0xff] %v1646
        %1710 = vst [vmem:[%s164 + $0xb8] sm:$0xff] %v1647
        %1711 = vst [vmem:[%s164 + $0xc0] sm:$0xff] %v1648
        %1712 = vst [vmem:[%s164 + $0xc8] sm:$0xff] %v1649
        %1713 = vst [vmem:[%s164 + $0xd0] sm:$0xff] %v1650
        %1714 = vst [vmem:[%s164 + $0xd8] sm:$0xff] %v1651
        %1715 = vst [vmem:[%s164 + $0xe0] sm:$0xff] %v1652
        %1716 = vst [vmem:[%s164 + $0xe8] sm:$0xff] %v1653
        %1717 = vst [vmem:[%s164 + $0xf0] sm:$0xff] %v1654
        %1718 = vst [vmem:[%s164 + $0xf8] sm:$0xff] %v1655
        %1719 = vst [vmem:[%s164 + $0x100] sm:$0xff] %v1656
        %1720 = vst [vmem:[%s164 + $0x108] sm:$0xff] %v1657
        %1721 = vst [vmem:[%s164 + $0x110] sm:$0xff] %v1658
        %1722 = vst [vmem:[%s164 + $0x118] sm:$0xff] %v1659
        %1723 = vst [vmem:[%s164 + $0x120] sm:$0xff] %v1660
        %1724 = vst [vmem:[%s164 + $0x128] sm:$0xff] %v1661
        %1725 = vst [vmem:[%s164 + $0x130] sm:$0xff] %v1662
        %1726 = vst [vmem:[%s164 + $0x138] sm:$0xff] %v1663
        %1727 = vst [vmem:[%s164 + $0x140] sm:$0xff] %v1664
        %1728 = vst [vmem:[%s164 + $0x148] sm:$0xff] %v1665
        %1729 = vst [vmem:[%s164 + $0x150] sm:$0xff] %v1666
        %1730 = vst [vmem:[%s164 + $0x158] sm:$0xff] %v1667
        %1731 = vst [vmem:[%s164 + $0x160] sm:$0xff] %v1668
        %1732 = vst [vmem:[%s164 + $0x168] sm:$0xff] %v1669
        %1733 = vst [vmem:[%s164 + $0x170] sm:$0xff] %v1670
        %1734 = vst [vmem:[%s164 + $0x178] sm:$0xff] %v1671
        %1735 = vst [vmem:[%s164 + $0x180] sm:$0xff] %v1672
        %1736 = vst [vmem:[%s164 + $0x188] sm:$0xff] %v1673
        %1737 = vst [vmem:[%s164 + $0x190] sm:$0xff] %v1674
        %1738 = vst [vmem:[%s164 + $0x198] sm:$0xff] %v1675
        %1739 = vst [vmem:[%s164 + $0x1a0] sm:$0xff] %v1676
        %1740 = vst [vmem:[%s164 + $0x1a8] sm:$0xff] %v1677
        %1741 = vst [vmem:[%s164 + $0x1b0] sm:$0xff] %v1678
        %1742 = vst [vmem:[%s164 + $0x1b8] sm:$0xff] %v1679
        %1743 = vst [vmem:[%s164 + $0x1c0] sm:$0xff] %v1680
        %1744 = vst [vmem:[%s164 + $0x1c8] sm:$0xff] %v1681
        %1745 = vst [vmem:[%s164 + $0x1d0] sm:$0xff] %v1682
        %1746 = vst [vmem:[%s164 + $0x1d8] sm:$0xff] %v1683
        %1747 = vst [vmem:[%s164 + $0x1e0] sm:$0xff] %v1684
        %1748 = vst [vmem:[%s164 + $0x1e8] sm:$0xff] %v1685
        %1749 = vst [vmem:[%s164 + $0x1f0] sm:$0xff] %v1686
        %s1750 = sand.u32 %s93, 1
        %s1751 = scalar_lea.sflag [#allocation3], %s1750
        %s1752 = sand.u32 %s93, 1
        %s1753 = smul.addr %s1752, 504
        %s1754 = scalar_lea.vmem [#allocation2], %s1753
        // Predicated region
        $region33: #{tpu_custom_call.1} parent=31 // pred_check
          %p1755 = pneg %p103
        $region34: #{tpu_custom_call.1} parent=31 // pred_check_branch
          %1757 = sbr.rel (%p1755) target = $region36
        $region35: #{tpu_custom_call.1} parent=31 // pred_region
          %s1758 = smul.u32 63, %s17
          %s1760 = ssub.s32 8064, 8064
          %1761 = vsyncadd %s1751, %s1760
          %s1762 = smul.addr %s1758, 128
          %s1763 = scalar_lea.hbm %s3, %s1762
          %s1764 = sshll.u32 %s1754, 4
          %s1765 = int_to_ptr.vmem [resolvable:$true] %s1764
          %1770 = dma.vmem_to_hbm [thread:$0]  %s1765, 8064, %s1763, %s1751, 128, 128, 8
        $region36: #{tpu_custom_call.1} parent=31 // pred_fallthru
          _
      $region32: #{tpu_custom_call.1} parent=5 // pred_fallthru
        _
      %p1771 = scmp.le.s32.totalorder 2, %s12
      // Predicated region
      $region37: #{tpu_custom_call.1} parent=5 // pred_check
        %p1772 = pneg %p1771
      $region38: #{tpu_custom_call.1} parent=5 // pred_check_branch
        %1774 = sbr.rel (%p1772) target = $region40
      $region39: #{tpu_custom_call.1} parent=5 // pred_region
        %s1775 = ssub.s32 %s12, 2
        // Predicated region
        $region41: #{tpu_custom_call.1} parent=39 // pred_check
          %p1776 = pneg %p109
        $region42: #{tpu_custom_call.1} parent=39 // pred_check_branch
          %1778 = sbr.rel (%p1776) target = $region44
        $region43: #{tpu_custom_call.1} parent=39 // pred_region
          %s1779 = sand.u32 %s94, 1
          %s1780 = scalar_lea.sflag [#allocation3], %s1779
          %s1781 = sand.u32 %s94, 1
          %s1782 = smul.addr %s1781, 504
          %s1783 = scalar_lea.vmem [#allocation2], %s1782
          %1784 = dma.done %s1780, 8064
        $region44: #{tpu_custom_call.1} parent=39 // pred_fallthru
          _
      $region40: #{tpu_custom_call.1} parent=5 // pred_fallthru
        _
    $region6: #{tpu_custom_call.1} parent=1 // loop_footer
      %s16 = sadd.s32 1, %s12
    $region7: #{tpu_custom_call.1} parent=1 // loop_footer_branch
      %11 = sbr.rel target = $region3
    $region8: #{tpu_custom_call.1} parent=1 // loop_exit
      _
    %1785 = vsyncpa [#allocation3], 1
    %s1786 = scalar_lea.sflag [#allocation3], 1
    %1787 = vsyncpa %s1786, 1

</llo_original>
